<compile_context>
chip_gen: v7x
topology: tpu7x:2x2x1
jax: 0.10.0
libtpu: 0.0.40
codegen_flags: <defaults>
</compile_context>

<pallas_src>
import functools
import math

import jax
import jax.numpy as jnp
from jax.experimental import pallas as pl
from jax.experimental.pallas import tpu as pltpu

_BN_EPS = 1e-5


# ----------------------------------------------------------------------------
# Fused per-layer kernel (one MultibranchTemporalBlock, one batch element / step)
# ----------------------------------------------------------------------------
def _fused_layer_kernel(*refs, Kmax, dil, T, H, Hn, has_downsample):
    """Channels-first; time on the lane (last) axis.

    refs (inputs, then output):
      xpad_ref : (1, Cin, T + 2H)     layer input, zero-padded by H, compute dtype
      w0_ref   : (Cmid, Kmax*Cin)     stage-0 packed branch weights (col = j*Cin + c)
      s0_ref   : (Cmid, 1)            stage-0 folded BN scale  gamma/sqrt(var+eps)
      sh0_ref  : (Cmid, 1)            stage-0 folded BN shift  beta - mean*scale + bias*scale
      w1_ref   : (Cout, Kmax*Cmid)    stage-1 packed branch weights
      s1_ref   : (Cout, 1)
      sh1_ref  : (Cout, 1)
      [wd_ref  : (Cout, Cin)          1x1 downsample weight (only if has_downsample)]
      [bd_ref  : (Cout, 1)            1x1 downsample bias]
      out_ref  : (1, Cout, T + 2Hn)   output, pre-padded with the NEXT layer's halo
    """
    if has_downsample:
        (xpad_ref, w0_ref, s0_ref, sh0_ref,
         w1_ref, s1_ref, sh1_ref, wd_ref, bd_ref, out_ref) = refs
    else:
        (xpad_ref, w0_ref, s0_ref, sh0_ref,
         w1_ref, s1_ref, sh1_ref, out_ref) = refs
        wd_ref = bd_ref = None

    cdt = xpad_ref.dtype
    cmid = s0_ref.shape[0]
    cout = out_ref.shape[1]

    # ---- stage 0: all branches in ONE im2col MXU dot -------------------------
    # im2col rows are ordered (tap j, channel c) -> row j*Cin + c, matching w0.
    im0 = jnp.concatenate(
        [xpad_ref[0, :, j * dil: j * dil + T] for j in range(Kmax)], axis=0)
    acc0 = jnp.dot(w0_ref[...], im0, preferred_element_type=jnp.float32)   # (Cmid, T)
    h0 = jnp.maximum(acc0 * s0_ref[...] + sh0_ref[...], 0.0).astype(cdt)

    # ---- stage 1: zero-extend h0 by value (no VMEM scratch, no halo stores) --
    if H > 0:
        zh = jnp.zeros((cmid, H), cdt)
        h0p = jnp.concatenate([zh, h0, zh], axis=1)                        # (Cmid, T+2H)
    else:
        h0p = h0
    im1 = jnp.concatenate(
        [h0p[:, j * dil: j * dil + T] for j in range(Kmax)], axis=0)
    acc1 = jnp.dot(w1_ref[...], im1, preferred_element_type=jnp.float32)   # (Cout, T)
    y = acc1 * s1_ref[...] + sh1_ref[...]

    # ---- residual (1x1 conv or identity) + final ReLU -------------------------
    x_mid = xpad_ref[0, :, H:H + T]                                        # (Cin, T)
    if has_downsample:
        res = jnp.dot(wd_ref[...], x_mid,
                      preferred_element_type=jnp.float32) + bd_ref[...]
    else:
        res = x_mid.astype(jnp.float32)
    yo = jnp.maximum(y + res, 0.0).astype(out_ref.dtype)

    # ---- emit, pre-padded with the next layer's halo (bf16 for hidden layers) -
    if Hn > 0:
        out_ref[0, :, 0:Hn] = jnp.zeros((cout, Hn), out_ref.dtype)
        out_ref[0, :, Hn + T:] = jnp.zeros((cout, Hn), out_ref.dtype)
    out_ref[0, :, Hn:Hn + T] = yo


# ----------------------------------------------------------------------------
# Per-layer wrapper
# ----------------------------------------------------------------------------
def fused_layer_forward(xpad_bct, layer, *, T, h_next, out_dtype):
    """xpad_bct: (B, Cin, T + 2H) in compute dtype, padded with THIS layer's halo.
    Returns (B, Cout, T + 2*h_next) in out_dtype, padded with the NEXT layer's halo."""
    B, Cin, Tp = xpad_bct.shape
    Kmax, dil = layer["Kmax"], layer["dilation"]
    cdt = layer["compute_dtype"]
    H = (Kmax - 1) * dil // 2                      # symmetric-chomp halo
    assert Tp == T + 2 * H, (Tp, T, H)

    w0, s0, sh0 = layer["stage0"]
    w1, s1, sh1 = layer["stage1"]
    Cmid, Cout = w0.shape[0], w1.shape[0]
    has_ds = layer["downsample"] is not None
    To = T + 2 * h_next

    kernel = functools.partial(_fused_layer_kernel, Kmax=Kmax, dil=dil, T=T,
                               H=H, Hn=h_next, has_downsample=has_ds)

    in_specs = [
        pl.BlockSpec((1, Cin, Tp), lambda b: (b, 0, 0)),
        pl.BlockSpec((Cmid, Kmax * Cin), lambda b: (0, 0)),
        pl.BlockSpec((Cmid, 1), lambda b: (0, 0)),
        pl.BlockSpec((Cmid, 1), lambda b: (0, 0)),
        pl.BlockSpec((Cout, Kmax * Cmid), lambda b: (0, 0)),
        pl.BlockSpec((Cout, 1), lambda b: (0, 0)),
        pl.BlockSpec((Cout, 1), lambda b: (0, 0)),
    ]
    args = [xpad_bct, w0, s0, sh0, w1, s1, sh1]
    if has_ds:
        wd, bd = layer["downsample"]
        in_specs += [pl.BlockSpec((Cout, Cin), lambda b: (0, 0)),
                     pl.BlockSpec((Cout, 1), lambda b: (0, 0))]
        args += [wd, bd]

    # Explicit per-layer VMEM budget -> scoped limit (kept well under v7x's 64 MiB).
    cb = jnp.dtype(cdt).itemsize
    ob = jnp.dtype(out_dtype).itemsize
    wbytes = (w0.size + w1.size + (layer["downsample"][0].size if has_ds else 0)) * cb
    est = (2 * Cin * Tp * cb                 # double-buffered input block
           + 2 * wbytes                      # weights (default double-buffering)
           + 2 * Cout * To * ob              # double-buffered output block
           + Kmax * (Cin + Cmid) * T * cb    # im2col temporaries
           + Cmid * Tp * cb                  # zero-extended stage-0 activation
           + (Cmid + Cout) * T * 4 * 2)      # f32 accumulators / epilogue headroom
    vmem_limit = int(min(48 * 2 ** 20, max(32 * 2 ** 20, 2 * est)))

    return pl.pallas_call(
        kernel,
        out_shape=jax.ShapeDtypeStruct((B, Cout, To), out_dtype),
        grid=(B,),
        in_specs=in_specs,
        out_specs=pl.BlockSpec((1, Cout, To), lambda b: (b, 0, 0)),
        compiler_params=pltpu.CompilerParams(
            dimension_semantics=("parallel",),
            vmem_limit_bytes=vmem_limit),
    )(*args)


# ----------------------------------------------------------------------------
# Parameter init + packing (deterministic, PyTorch-like shapes / init bounds)
# ----------------------------------------------------------------------------
def _init_conv(key, cin, cout, k):
    """Conv1d default init (uniform +-1/sqrt(cin*k)); PyTorch layout (Cout, Cin, K)."""
    kw, kb = jax.random.split(key)
    bound = 1.0 / math.sqrt(cin * k)
    w = jax.random.uniform(kw, (cout, cin, k), jnp.float32, -bound, bound)
    b = jax.random.uniform(kb, (cout,), jnp.float32, -bound, bound)
    return w, b


def _init_bn(cout):
    # Fresh BatchNorm1d in eval mode (running stats): gamma=1, beta=0, mean=0, var=1.
    gamma = jnp.ones((cout,), jnp.float32)
    beta = jnp.zeros((cout,), jnp.float32)
    mean = jnp.zeros((cout,), jnp.float32)
    var = jnp.ones((cout,), jnp.float32)
    return gamma, beta, mean, var


def _pack_stage(key, cin, branch_out, kernel_sizes, Kmax, compute_dtype):
    """Pack all branches of one conv stage into one (Cout_total, Kmax*cin) weight
    (zero taps for k < Kmax, centered) plus folded BN scale/shift (conv bias folded)."""
    ws, scales, shifts = [], [], []
    for k in kernel_sizes:
        key, sk = jax.random.split(key)
        w, b = _init_conv(sk, cin, branch_out, k)           # (bout, cin, k), (bout,)
        gamma, beta, mean, var = _init_bn(branch_out)
        scale = gamma / jnp.sqrt(var + _BN_EPS)
        shift = beta - mean * scale + b * scale             # general fold, bias included
        padlo = (Kmax - k) // 2
        w = jnp.pad(w, ((0, 0), (0, 0), (padlo, Kmax - k - padlo)))  # centered zero taps
        # Column order must match the kernel's im2col row order: col = j*cin + c.
        w = jnp.transpose(w, (0, 2, 1)).reshape(branch_out, Kmax * cin)
        ws.append(w)
        scales.append(scale)
        shifts.append(shift)
    W = jnp.concatenate(ws, axis=0).astype(compute_dtype)   # (nk*bout, Kmax*cin)
    S = jnp.concatenate(scales).reshape(-1, 1)
    Sh = jnp.concatenate(shifts).reshape(-1, 1)
    return W, S, Sh


def init_mbtcn_params(key, num_inputs, num_channels, kernel_sizes,
                      compute_dtype=jnp.bfloat16):
    num_kernels = len(kernel_sizes)
    Kmax = max(kernel_sizes)
    assert all((Kmax - k) % 2 == 0 for k in kernel_sizes), \
        "fused-branch packing requires kernel sizes of equal parity"
    layers = []
    for i, out_ch in enumerate(num_channels):
        in_ch = num_inputs if i == 0 else num_channels[i - 1]
        dilation = 2 ** i
        assert out_ch % num_kernels == 0
        branch_out = out_ch // num_kernels
        for k in kernel_sizes:
            assert ((k - 1) * dilation) % 2 == 0, "symmetric chomp needs even padding"
        key, k0, k1, kd = jax.random.split(key, 4)
        stage0 = _pack_stage(k0, in_ch, branch_out, kernel_sizes, Kmax, compute_dtype)
        stage1 = _pack_stage(k1, out_ch, branch_out, kernel_sizes, Kmax, compute_dtype)
        if in_ch // num_kernels != out_ch:                   # reference module's condition
            wd, bd = _init_conv(kd, in_ch, out_ch, 1)        # 1x1 conv, no BN
            downsample = (wd.reshape(out_ch, in_ch).astype(compute_dtype),
                          bd.reshape(out_ch, 1))
        else:
            downsample = None
        layers.append(dict(dilation=dilation, Kmax=Kmax, stage0=stage0,
                           stage1=stage1, downsample=downsample,
                           compute_dtype=compute_dtype))
    return layers


# ----------------------------------------------------------------------------
# Forward pass
# ----------------------------------------------------------------------------
def multibranch_tcn_forward(x_ncl, params):
    """x_ncl: (B, C_in, T) float32, PyTorch NCL layout.  Returns (B, C_out, T) f32."""
    B, _, T = x_ncl.shape
    cdt = params[0]["compute_dtype"]
    halos = [(lyr["Kmax"] - 1) * lyr["dilation"] // 2 for lyr in params]
    # Pad + cast ONCE for the whole network; every layer writes its output already
    # padded with the next layer's halo and already in the compute dtype.
    x = jnp.pad(x_ncl, ((0, 0), (0, 0), (halos[0], halos[0]))).astype(cdt)
    for i, layer in enumerate(params):
        last = i == len(params) - 1
        x = fused_layer_forward(x, layer, T=T,
                                h_next=0 if last else halos[i + 1],
                                out_dtype=jnp.float32 if last else cdt)
    return x


# ----------------------------------------------------------------------------
# Main
# ----------------------------------------------------------------------------
if __name__ == "__main__":
    B, num_inputs, T = 2, 8, 16
    num_channels = [16, 16]
    tcn_options = {"kernel_size": [3, 5]}

    root = jax.random.PRNGKey(0)
    kx, kp = jax.random.split(root)
    x = jax.random.normal(kx, (B, num_inputs, T), jnp.float32)   # NCL input

    params = init_mbtcn_params(kp, num_inputs, num_channels,
                               tcn_options["kernel_size"])

    fwd = jax.jit(lambda xin: multibranch_tcn_forward(xin, params))
    out = fwd(x)
    jax.block_until_ready(out)

    assert out.shape == (B, num_channels[-1], T), out.shape
    assert jnp.all(jnp.isfinite(out))
    print("KERNEL_OK")
</pallas_src>

<mosaic_0001>
module attributes {stable_mosaic.version = 11 : i64} {
  func.func @_fused_layer_kernel(%arg0: i32, %arg1: memref<1x8x20xbf16, #tpu.memory_space<vmem>>, %arg2: memref<16x40xbf16, #tpu.memory_space<vmem>>, %arg3: memref<16x1xf32, #tpu.memory_space<vmem>>, %arg4: memref<16x1xf32, #tpu.memory_space<vmem>>, %arg5: memref<16x80xbf16, #tpu.memory_space<vmem>>, %arg6: memref<16x1xf32, #tpu.memory_space<vmem>>, %arg7: memref<16x1xf32, #tpu.memory_space<vmem>>, %arg8: memref<16x8xbf16, #tpu.memory_space<vmem>>, %arg9: memref<16x1xf32, #tpu.memory_space<vmem>>, %arg10: memref<1x16x24xbf16, #tpu.memory_space<vmem>>) attributes {dimension_semantics = [#tpu.dimension_semantics<parallel>], iteration_bounds = array<i64: 2>, scalar_prefetch = 0 : i64, scratch_operands = 0 : i64, tpu.core_type = #tpu.core_type<tc>, window_params = [{transform_indices = @transform_0, window_bounds = array<i64: 1, 8, 20>}, {pipeline_mode = #tpu.pipeline_mode<synchronous>, transform_indices = @transform_1, window_bounds = array<i64: 16, 40>}, {pipeline_mode = #tpu.pipeline_mode<synchronous>, transform_indices = @transform_2, window_bounds = array<i64: 16, 1>}, {pipeline_mode = #tpu.pipeline_mode<synchronous>, transform_indices = @transform_3, window_bounds = array<i64: 16, 1>}, {pipeline_mode = #tpu.pipeline_mode<synchronous>, transform_indices = @transform_4, window_bounds = array<i64: 16, 80>}, {pipeline_mode = #tpu.pipeline_mode<synchronous>, transform_indices = @transform_5, window_bounds = array<i64: 16, 1>}, {pipeline_mode = #tpu.pipeline_mode<synchronous>, transform_indices = @transform_6, window_bounds = array<i64: 16, 1>}, {pipeline_mode = #tpu.pipeline_mode<synchronous>, transform_indices = @transform_7, window_bounds = array<i64: 16, 8>}, {pipeline_mode = #tpu.pipeline_mode<synchronous>, transform_indices = @transform_8, window_bounds = array<i64: 16, 1>}, {transform_indices = @transform_9, window_bounds = array<i64: 1, 16, 24>}]} {
    %c0 = arith.constant 0 : index
    %c0_0 = arith.constant 0 : index
    %c0_1 = arith.constant 0 : index
    %0 = vector.load %arg1[%c0, %c0_0, %c0_1] : memref<1x8x20xbf16, #tpu.memory_space<vmem>>, vector<1x8x16xbf16>
    %1 = vector.shape_cast %0 : vector<1x8x16xbf16> to vector<8x16xbf16>
    %c0_2 = arith.constant 0 : index
    %c0_3 = arith.constant 0 : index
    %c1 = arith.constant 1 : index
    %2 = vector.load %arg1[%c0_2, %c0_3, %c1] : memref<1x8x20xbf16, #tpu.memory_space<vmem>>, vector<1x8x16xbf16>
    %3 = vector.shape_cast %2 : vector<1x8x16xbf16> to vector<8x16xbf16>
    %c0_4 = arith.constant 0 : index
    %c0_5 = arith.constant 0 : index
    %c2 = arith.constant 2 : index
    %4 = vector.load %arg1[%c0_4, %c0_5, %c2] : memref<1x8x20xbf16, #tpu.memory_space<vmem>>, vector<1x8x16xbf16>
    %5 = vector.shape_cast %4 : vector<1x8x16xbf16> to vector<8x16xbf16>
    %c0_6 = arith.constant 0 : index
    %c0_7 = arith.constant 0 : index
    %c3 = arith.constant 3 : index
    %6 = vector.load %arg1[%c0_6, %c0_7, %c3] : memref<1x8x20xbf16, #tpu.memory_space<vmem>>, vector<1x8x16xbf16>
    %7 = vector.shape_cast %6 : vector<1x8x16xbf16> to vector<8x16xbf16>
    %c0_8 = arith.constant 0 : index
    %c0_9 = arith.constant 0 : index
    %c4 = arith.constant 4 : index
    %8 = vector.load %arg1[%c0_8, %c0_9, %c4] : memref<1x8x20xbf16, #tpu.memory_space<vmem>>, vector<1x8x16xbf16>
    %9 = vector.shape_cast %8 : vector<1x8x16xbf16> to vector<8x16xbf16>
    %10 = tpu.concatenate %1, %3, %5, %7, %9 in 0 : vector<8x16xbf16>, vector<8x16xbf16>, vector<8x16xbf16>, vector<8x16xbf16>, vector<8x16xbf16> -> vector<40x16xbf16>
    %c0_10 = arith.constant 0 : index
    %c0_11 = arith.constant 0 : index
    %11 = vector.load %arg2[%c0_10, %c0_11] : memref<16x40xbf16, #tpu.memory_space<vmem>>, vector<16x40xbf16>
    %cst = arith.constant dense<0.000000e+00> : vector<16x16xf32>
    %12 = tpu.matmul %11, %10, %cst {dimension_numbers = #tpu.dot_dimension_numbers<[1], [0], [0], [1], [0, 0, 1, 1], [], []>} : vector<16x40xbf16>, vector<40x16xbf16>, vector<16x16xf32> -> vector<16x16xf32>
    %c0_12 = arith.constant 0 : index
    %c0_13 = arith.constant 0 : index
    %13 = vector.load %arg3[%c0_12, %c0_13] : memref<16x1xf32, #tpu.memory_space<vmem>>, vector<16x1xf32>
    %14 = vector.broadcast %13 : vector<16x1xf32> to vector<16x16xf32>
    %15 = arith.mulf %12, %14 : vector<16x16xf32>
    %c0_14 = arith.constant 0 : index
    %c0_15 = arith.constant 0 : index
    %16 = vector.load %arg4[%c0_14, %c0_15] : memref<16x1xf32, #tpu.memory_space<vmem>>, vector<16x1xf32>
    %17 = vector.broadcast %16 : vector<16x1xf32> to vector<16x16xf32>
    %18 = arith.addf %15, %17 : vector<16x16xf32>
    %cst_16 = arith.constant 0.000000e+00 : f32
    %19 = vector.broadcast %cst_16 : f32 to vector<16x16xf32>
    %20 = arith.maximumf %18, %19 : vector<16x16xf32>
    %21 = arith.truncf %20 : vector<16x16xf32> to vector<16x16xbf16>
    %cst_17 = arith.constant 0.000000e+00 : bf16
    %22 = vector.broadcast %cst_17 : bf16 to vector<16x2xbf16>
    %23 = tpu.concatenate %22, %21, %22 in 1 : vector<16x2xbf16>, vector<16x16xbf16>, vector<16x2xbf16> -> vector<16x20xbf16>
    %24 = vector.extract_strided_slice %23 {offsets = [0, 0], sizes = [16, 16], strides = [1, 1]} : vector<16x20xbf16> to vector<16x16xbf16>
    %25 = vector.extract_strided_slice %23 {offsets = [0, 1], sizes = [16, 16], strides = [1, 1]} : vector<16x20xbf16> to vector<16x16xbf16>
    %26 = vector.extract_strided_slice %23 {offsets = [0, 2], sizes = [16, 16], strides = [1, 1]} : vector<16x20xbf16> to vector<16x16xbf16>
    %27 = vector.extract_strided_slice %23 {offsets = [0, 3], sizes = [16, 16], strides = [1, 1]} : vector<16x20xbf16> to vector<16x16xbf16>
    %28 = vector.extract_strided_slice %23 {offsets = [0, 4], sizes = [16, 16], strides = [1, 1]} : vector<16x20xbf16> to vector<16x16xbf16>
    %29 = tpu.concatenate %24, %25, %26, %27, %28 in 0 : vector<16x16xbf16>, vector<16x16xbf16>, vector<16x16xbf16>, vector<16x16xbf16>, vector<16x16xbf16> -> vector<80x16xbf16>
    %c0_18 = arith.constant 0 : index
    %c0_19 = arith.constant 0 : index
    %30 = vector.load %arg5[%c0_18, %c0_19] : memref<16x80xbf16, #tpu.memory_space<vmem>>, vector<16x80xbf16>
    %cst_20 = arith.constant dense<0.000000e+00> : vector<16x16xf32>
    %31 = tpu.matmul %30, %29, %cst_20 {dimension_numbers = #tpu.dot_dimension_numbers<[1], [0], [0], [1], [0, 0, 1, 1], [], []>} : vector<16x80xbf16>, vector<80x16xbf16>, vector<16x16xf32> -> vector<16x16xf32>
    %c0_21 = arith.constant 0 : index
    %c0_22 = arith.constant 0 : index
    %32 = vector.load %arg6[%c0_21, %c0_22] : memref<16x1xf32, #tpu.memory_space<vmem>>, vector<16x1xf32>
    %33 = vector.broadcast %32 : vector<16x1xf32> to vector<16x16xf32>
    %34 = arith.mulf %31, %33 : vector<16x16xf32>
    %c0_23 = arith.constant 0 : index
    %c0_24 = arith.constant 0 : index
    %35 = vector.load %arg7[%c0_23, %c0_24] : memref<16x1xf32, #tpu.memory_space<vmem>>, vector<16x1xf32>
    %36 = vector.broadcast %35 : vector<16x1xf32> to vector<16x16xf32>
    %37 = arith.addf %34, %36 : vector<16x16xf32>
    %c0_25 = arith.constant 0 : index
    %c0_26 = arith.constant 0 : index
    %c2_27 = arith.constant 2 : index
    %38 = vector.load %arg1[%c0_25, %c0_26, %c2_27] : memref<1x8x20xbf16, #tpu.memory_space<vmem>>, vector<1x8x16xbf16>
    %39 = vector.shape_cast %38 : vector<1x8x16xbf16> to vector<8x16xbf16>
    %c0_28 = arith.constant 0 : index
    %c0_29 = arith.constant 0 : index
    %40 = vector.load %arg8[%c0_28, %c0_29] : memref<16x8xbf16, #tpu.memory_space<vmem>>, vector<16x8xbf16>
    %cst_30 = arith.constant dense<0.000000e+00> : vector<16x16xf32>
    %41 = tpu.matmul %40, %39, %cst_30 {dimension_numbers = #tpu.dot_dimension_numbers<[1], [0], [0], [1], [0, 0, 1, 1], [], []>} : vector<16x8xbf16>, vector<8x16xbf16>, vector<16x16xf32> -> vector<16x16xf32>
    %c0_31 = arith.constant 0 : index
    %c0_32 = arith.constant 0 : index
    %42 = vector.load %arg9[%c0_31, %c0_32] : memref<16x1xf32, #tpu.memory_space<vmem>>, vector<16x1xf32>
    %43 = vector.broadcast %42 : vector<16x1xf32> to vector<16x16xf32>
    %44 = arith.addf %41, %43 : vector<16x16xf32>
    %45 = arith.addf %37, %44 : vector<16x16xf32>
    %cst_33 = arith.constant 0.000000e+00 : f32
    %46 = vector.broadcast %cst_33 : f32 to vector<16x16xf32>
    %47 = arith.maximumf %45, %46 : vector<16x16xf32>
    %48 = arith.truncf %47 : vector<16x16xf32> to vector<16x16xbf16>
    %cst_34 = arith.constant 0.000000e+00 : bf16
    %49 = vector.broadcast %cst_34 : bf16 to vector<16x4xbf16>
    %c0_35 = arith.constant 0 : index
    %c0_36 = arith.constant 0 : index
    %c0_37 = arith.constant 0 : index
    %50 = vector.load %arg10[%c0_35, %c0_36, %c0_37] : memref<1x16x24xbf16, #tpu.memory_space<vmem>>, vector<1x16x4xbf16>
    %51 = vector.shape_cast %50 : vector<1x16x4xbf16> to vector<16x4xbf16>
    %52 = vector.shape_cast %49 : vector<16x4xbf16> to vector<1x16x4xbf16>
    tpu.vector_store %arg10[%c0_35, %c0_36, %c0_37], %52 {strides = array<i32>} : memref<1x16x24xbf16, #tpu.memory_space<vmem>>, vector<1x16x4xbf16>,
    %cst_38 = arith.constant 0.000000e+00 : bf16
    %53 = vector.broadcast %cst_38 : bf16 to vector<16x4xbf16>
    %c0_39 = arith.constant 0 : index
    %c0_40 = arith.constant 0 : index
    %c20 = arith.constant 20 : index
    %54 = vector.load %arg10[%c0_39, %c0_40, %c20] : memref<1x16x24xbf16, #tpu.memory_space<vmem>>, vector<1x16x4xbf16>
    %55 = vector.shape_cast %54 : vector<1x16x4xbf16> to vector<16x4xbf16>
    %56 = vector.shape_cast %53 : vector<16x4xbf16> to vector<1x16x4xbf16>
    tpu.vector_store %arg10[%c0_39, %c0_40, %c20], %56 {strides = array<i32>} : memref<1x16x24xbf16, #tpu.memory_space<vmem>>, vector<1x16x4xbf16>,
    %c0_41 = arith.constant 0 : index
    %c0_42 = arith.constant 0 : index
    %c4_43 = arith.constant 4 : index
    %57 = vector.load %arg10[%c0_41, %c0_42, %c4_43] : memref<1x16x24xbf16, #tpu.memory_space<vmem>>, vector<1x16x16xbf16>
    %58 = vector.shape_cast %57 : vector<1x16x16xbf16> to vector<16x16xbf16>
    %59 = vector.shape_cast %48 : vector<16x16xbf16> to vector<1x16x16xbf16>
    tpu.vector_store %arg10[%c0_41, %c0_42, %c4_43], %59 {strides = array<i32>} : memref<1x16x24xbf16, #tpu.memory_space<vmem>>, vector<1x16x16xbf16>,
    return
  }
  func.func @transform_0(%arg0: i32) -> (i32, i32, i32) {
    %c0_i32 = arith.constant 0 : i32
    %c0_i32_0 = arith.constant 0 : i32
    %c0_i32_1 = arith.constant 0 : i32
    return %arg0, %c0_i32, %c0_i32_0 : i32, i32, i32
  }
  func.func @transform_1(%arg0: i32) -> (i32, i32) {
    %c0_i32 = arith.constant 0 : i32
    %c0_i32_0 = arith.constant 0 : i32
    %c0_i32_1 = arith.constant 0 : i32
    return %c0_i32, %c0_i32_0 : i32, i32
  }
  func.func @transform_2(%arg0: i32) -> (i32, i32) {
    %c0_i32 = arith.constant 0 : i32
    %c0_i32_0 = arith.constant 0 : i32
    %c0_i32_1 = arith.constant 0 : i32
    return %c0_i32, %c0_i32_0 : i32, i32
  }
  func.func @transform_3(%arg0: i32) -> (i32, i32) {
    %c0_i32 = arith.constant 0 : i32
    %c0_i32_0 = arith.constant 0 : i32
    %c0_i32_1 = arith.constant 0 : i32
    return %c0_i32, %c0_i32_0 : i32, i32
  }
  func.func @transform_4(%arg0: i32) -> (i32, i32) {
    %c0_i32 = arith.constant 0 : i32
    %c0_i32_0 = arith.constant 0 : i32
    %c0_i32_1 = arith.constant 0 : i32
    return %c0_i32, %c0_i32_0 : i32, i32
  }
  func.func @transform_5(%arg0: i32) -> (i32, i32) {
    %c0_i32 = arith.constant 0 : i32
    %c0_i32_0 = arith.constant 0 : i32
    %c0_i32_1 = arith.constant 0 : i32
    return %c0_i32, %c0_i32_0 : i32, i32
  }
  func.func @transform_6(%arg0: i32) -> (i32, i32) {
    %c0_i32 = arith.constant 0 : i32
    %c0_i32_0 = arith.constant 0 : i32
    %c0_i32_1 = arith.constant 0 : i32
    return %c0_i32, %c0_i32_0 : i32, i32
  }
  func.func @transform_7(%arg0: i32) -> (i32, i32) {
    %c0_i32 = arith.constant 0 : i32
    %c0_i32_0 = arith.constant 0 : i32
    %c0_i32_1 = arith.constant 0 : i32
    return %c0_i32, %c0_i32_0 : i32, i32
  }
  func.func @transform_8(%arg0: i32) -> (i32, i32) {
    %c0_i32 = arith.constant 0 : i32
    %c0_i32_0 = arith.constant 0 : i32
    %c0_i32_1 = arith.constant 0 : i32
    return %c0_i32, %c0_i32_0 : i32, i32
  }
  func.func @transform_9(%arg0: i32) -> (i32, i32, i32) {
    %c0_i32 = arith.constant 0 : i32
    %c0_i32_0 = arith.constant 0 : i32
    %c0_i32_1 = arith.constant 0 : i32
    return %arg0, %c0_i32, %c0_i32_0 : i32, i32, i32
  }
}

module attributes {stable_mosaic.version = 11 : i64} {
  func.func @_fused_layer_kernel(%arg0: i32, %arg1: memref<1x16x24xbf16, #tpu.memory_space<vmem>>, %arg2: memref<16x80xbf16, #tpu.memory_space<vmem>>, %arg3: memref<16x1xf32, #tpu.memory_space<vmem>>, %arg4: memref<16x1xf32, #tpu.memory_space<vmem>>, %arg5: memref<16x80xbf16, #tpu.memory_space<vmem>>, %arg6: memref<16x1xf32, #tpu.memory_space<vmem>>, %arg7: memref<16x1xf32, #tpu.memory_space<vmem>>, %arg8: memref<16x16xbf16, #tpu.memory_space<vmem>>, %arg9: memref<16x1xf32, #tpu.memory_space<vmem>>, %arg10: memref<1x16x16xf32, #tpu.memory_space<vmem>>) attributes {dimension_semantics = [#tpu.dimension_semantics<parallel>], iteration_bounds = array<i64: 2>, scalar_prefetch = 0 : i64, scratch_operands = 0 : i64, tpu.core_type = #tpu.core_type<tc>, window_params = [{transform_indices = @transform_0, window_bounds = array<i64: 1, 16, 24>}, {pipeline_mode = #tpu.pipeline_mode<synchronous>, transform_indices = @transform_1, window_bounds = array<i64: 16, 80>}, {pipeline_mode = #tpu.pipeline_mode<synchronous>, transform_indices = @transform_2, window_bounds = array<i64: 16, 1>}, {pipeline_mode = #tpu.pipeline_mode<synchronous>, transform_indices = @transform_3, window_bounds = array<i64: 16, 1>}, {pipeline_mode = #tpu.pipeline_mode<synchronous>, transform_indices = @transform_4, window_bounds = array<i64: 16, 80>}, {pipeline_mode = #tpu.pipeline_mode<synchronous>, transform_indices = @transform_5, window_bounds = array<i64: 16, 1>}, {pipeline_mode = #tpu.pipeline_mode<synchronous>, transform_indices = @transform_6, window_bounds = array<i64: 16, 1>}, {pipeline_mode = #tpu.pipeline_mode<synchronous>, transform_indices = @transform_7, window_bounds = array<i64: 16, 16>}, {pipeline_mode = #tpu.pipeline_mode<synchronous>, transform_indices = @transform_8, window_bounds = array<i64: 16, 1>}, {transform_indices = @transform_9, window_bounds = array<i64: 1, 16, 16>}]} {
    %c0 = arith.constant 0 : index
    %c0_0 = arith.constant 0 : index
    %c0_1 = arith.constant 0 : index
    %0 = vector.load %arg1[%c0, %c0_0, %c0_1] : memref<1x16x24xbf16, #tpu.memory_space<vmem>>, vector<1x16x16xbf16>
    %1 = vector.shape_cast %0 : vector<1x16x16xbf16> to vector<16x16xbf16>
    %c0_2 = arith.constant 0 : index
    %c0_3 = arith.constant 0 : index
    %c2 = arith.constant 2 : index
    %2 = vector.load %arg1[%c0_2, %c0_3, %c2] : memref<1x16x24xbf16, #tpu.memory_space<vmem>>, vector<1x16x16xbf16>
    %3 = vector.shape_cast %2 : vector<1x16x16xbf16> to vector<16x16xbf16>
    %c0_4 = arith.constant 0 : index
    %c0_5 = arith.constant 0 : index
    %c4 = arith.constant 4 : index
    %4 = vector.load %arg1[%c0_4, %c0_5, %c4] : memref<1x16x24xbf16, #tpu.memory_space<vmem>>, vector<1x16x16xbf16>
    %5 = vector.shape_cast %4 : vector<1x16x16xbf16> to vector<16x16xbf16>
    %c0_6 = arith.constant 0 : index
    %c0_7 = arith.constant 0 : index
    %c6 = arith.constant 6 : index
    %6 = vector.load %arg1[%c0_6, %c0_7, %c6] : memref<1x16x24xbf16, #tpu.memory_space<vmem>>, vector<1x16x16xbf16>
    %7 = vector.shape_cast %6 : vector<1x16x16xbf16> to vector<16x16xbf16>
    %c0_8 = arith.constant 0 : index
    %c0_9 = arith.constant 0 : index
    %c8 = arith.constant 8 : index
    %8 = vector.load %arg1[%c0_8, %c0_9, %c8] : memref<1x16x24xbf16, #tpu.memory_space<vmem>>, vector<1x16x16xbf16>
    %9 = vector.shape_cast %8 : vector<1x16x16xbf16> to vector<16x16xbf16>
    %10 = tpu.concatenate %1, %3, %5, %7, %9 in 0 : vector<16x16xbf16>, vector<16x16xbf16>, vector<16x16xbf16>, vector<16x16xbf16>, vector<16x16xbf16> -> vector<80x16xbf16>
    %c0_10 = arith.constant 0 : index
    %c0_11 = arith.constant 0 : index
    %11 = vector.load %arg2[%c0_10, %c0_11] : memref<16x80xbf16, #tpu.memory_space<vmem>>, vector<16x80xbf16>
    %cst = arith.constant dense<0.000000e+00> : vector<16x16xf32>
    %12 = tpu.matmul %11, %10, %cst {dimension_numbers = #tpu.dot_dimension_numbers<[1], [0], [0], [1], [0, 0, 1, 1], [], []>} : vector<16x80xbf16>, vector<80x16xbf16>, vector<16x16xf32> -> vector<16x16xf32>
    %c0_12 = arith.constant 0 : index
    %c0_13 = arith.constant 0 : index
    %13 = vector.load %arg3[%c0_12, %c0_13] : memref<16x1xf32, #tpu.memory_space<vmem>>, vector<16x1xf32>
    %14 = vector.broadcast %13 : vector<16x1xf32> to vector<16x16xf32>
    %15 = arith.mulf %12, %14 : vector<16x16xf32>
    %c0_14 = arith.constant 0 : index
    %c0_15 = arith.constant 0 : index
    %16 = vector.load %arg4[%c0_14, %c0_15] : memref<16x1xf32, #tpu.memory_space<vmem>>, vector<16x1xf32>
    %17 = vector.broadcast %16 : vector<16x1xf32> to vector<16x16xf32>
    %18 = arith.addf %15, %17 : vector<16x16xf32>
    %cst_16 = arith.constant 0.000000e+00 : f32
    %19 = vector.broadcast %cst_16 : f32 to vector<16x16xf32>
    %20 = arith.maximumf %18, %19 : vector<16x16xf32>
    %21 = arith.truncf %20 : vector<16x16xf32> to vector<16x16xbf16>
    %cst_17 = arith.constant 0.000000e+00 : bf16
    %22 = vector.broadcast %cst_17 : bf16 to vector<16x4xbf16>
    %23 = tpu.concatenate %22, %21, %22 in 1 : vector<16x4xbf16>, vector<16x16xbf16>, vector<16x4xbf16> -> vector<16x24xbf16>
    %24 = vector.extract_strided_slice %23 {offsets = [0, 0], sizes = [16, 16], strides = [1, 1]} : vector<16x24xbf16> to vector<16x16xbf16>
    %25 = vector.extract_strided_slice %23 {offsets = [0, 2], sizes = [16, 16], strides = [1, 1]} : vector<16x24xbf16> to vector<16x16xbf16>
    %26 = vector.extract_strided_slice %23 {offsets = [0, 4], sizes = [16, 16], strides = [1, 1]} : vector<16x24xbf16> to vector<16x16xbf16>
    %27 = vector.extract_strided_slice %23 {offsets = [0, 6], sizes = [16, 16], strides = [1, 1]} : vector<16x24xbf16> to vector<16x16xbf16>
    %28 = vector.extract_strided_slice %23 {offsets = [0, 8], sizes = [16, 16], strides = [1, 1]} : vector<16x24xbf16> to vector<16x16xbf16>
    %29 = tpu.concatenate %24, %25, %26, %27, %28 in 0 : vector<16x16xbf16>, vector<16x16xbf16>, vector<16x16xbf16>, vector<16x16xbf16>, vector<16x16xbf16> -> vector<80x16xbf16>
    %c0_18 = arith.constant 0 : index
    %c0_19 = arith.constant 0 : index
    %30 = vector.load %arg5[%c0_18, %c0_19] : memref<16x80xbf16, #tpu.memory_space<vmem>>, vector<16x80xbf16>
    %cst_20 = arith.constant dense<0.000000e+00> : vector<16x16xf32>
    %31 = tpu.matmul %30, %29, %cst_20 {dimension_numbers = #tpu.dot_dimension_numbers<[1], [0], [0], [1], [0, 0, 1, 1], [], []>} : vector<16x80xbf16>, vector<80x16xbf16>, vector<16x16xf32> -> vector<16x16xf32>
    %c0_21 = arith.constant 0 : index
    %c0_22 = arith.constant 0 : index
    %32 = vector.load %arg6[%c0_21, %c0_22] : memref<16x1xf32, #tpu.memory_space<vmem>>, vector<16x1xf32>
    %33 = vector.broadcast %32 : vector<16x1xf32> to vector<16x16xf32>
    %34 = arith.mulf %31, %33 : vector<16x16xf32>
    %c0_23 = arith.constant 0 : index
    %c0_24 = arith.constant 0 : index
    %35 = vector.load %arg7[%c0_23, %c0_24] : memref<16x1xf32, #tpu.memory_space<vmem>>, vector<16x1xf32>
    %36 = vector.broadcast %35 : vector<16x1xf32> to vector<16x16xf32>
    %37 = arith.addf %34, %36 : vector<16x16xf32>
    %c0_25 = arith.constant 0 : index
    %c0_26 = arith.constant 0 : index
    %c4_27 = arith.constant 4 : index
    %38 = vector.load %arg1[%c0_25, %c0_26, %c4_27] : memref<1x16x24xbf16, #tpu.memory_space<vmem>>, vector<1x16x16xbf16>
    %39 = vector.shape_cast %38 : vector<1x16x16xbf16> to vector<16x16xbf16>
    %c0_28 = arith.constant 0 : index
    %c0_29 = arith.constant 0 : index
    %40 = vector.load %arg8[%c0_28, %c0_29] : memref<16x16xbf16, #tpu.memory_space<vmem>>, vector<16x16xbf16>
    %cst_30 = arith.constant dense<0.000000e+00> : vector<16x16xf32>
    %41 = tpu.matmul %40, %39, %cst_30 {dimension_numbers = #tpu.dot_dimension_numbers<[1], [0], [0], [1], [0, 0, 1, 1], [], []>} : vector<16x16xbf16>, vector<16x16xbf16>, vector<16x16xf32> -> vector<16x16xf32>
    %c0_31 = arith.constant 0 : index
    %c0_32 = arith.constant 0 : index
    %42 = vector.load %arg9[%c0_31, %c0_32] : memref<16x1xf32, #tpu.memory_space<vmem>>, vector<16x1xf32>
    %43 = vector.broadcast %42 : vector<16x1xf32> to vector<16x16xf32>
    %44 = arith.addf %41, %43 : vector<16x16xf32>
    %45 = arith.addf %37, %44 : vector<16x16xf32>
    %cst_33 = arith.constant 0.000000e+00 : f32
    %46 = vector.broadcast %cst_33 : f32 to vector<16x16xf32>
    %47 = arith.maximumf %45, %46 : vector<16x16xf32>
    %c0_34 = arith.constant 0 : index
    %c0_35 = arith.constant 0 : index
    %c0_36 = arith.constant 0 : index
    %48 = vector.load %arg10[%c0_34, %c0_35, %c0_36] : memref<1x16x16xf32, #tpu.memory_space<vmem>>, vector<1x16x16xf32>
    %49 = vector.shape_cast %48 : vector<1x16x16xf32> to vector<16x16xf32>
    %50 = vector.shape_cast %47 : vector<16x16xf32> to vector<1x16x16xf32>
    tpu.vector_store %arg10[%c0_34, %c0_35, %c0_36], %50 {strides = array<i32>} : memref<1x16x16xf32, #tpu.memory_space<vmem>>, vector<1x16x16xf32>,
    return
  }
  func.func @transform_0(%arg0: i32) -> (i32, i32, i32) {
    %c0_i32 = arith.constant 0 : i32
    %c0_i32_0 = arith.constant 0 : i32
    %c0_i32_1 = arith.constant 0 : i32
    return %arg0, %c0_i32, %c0_i32_0 : i32, i32, i32
  }
  func.func @transform_1(%arg0: i32) -> (i32, i32) {
    %c0_i32 = arith.constant 0 : i32
    %c0_i32_0 = arith.constant 0 : i32
    %c0_i32_1 = arith.constant 0 : i32
    return %c0_i32, %c0_i32_0 : i32, i32
  }
  func.func @transform_2(%arg0: i32) -> (i32, i32) {
    %c0_i32 = arith.constant 0 : i32
    %c0_i32_0 = arith.constant 0 : i32
    %c0_i32_1 = arith.constant 0 : i32
    return %c0_i32, %c0_i32_0 : i32, i32
  }
  func.func @transform_3(%arg0: i32) -> (i32, i32) {
    %c0_i32 = arith.constant 0 : i32
    %c0_i32_0 = arith.constant 0 : i32
    %c0_i32_1 = arith.constant 0 : i32
    return %c0_i32, %c0_i32_0 : i32, i32
  }
  func.func @transform_4(%arg0: i32) -> (i32, i32) {
    %c0_i32 = arith.constant 0 : i32
    %c0_i32_0 = arith.constant 0 : i32
    %c0_i32_1 = arith.constant 0 : i32
    return %c0_i32, %c0_i32_0 : i32, i32
  }
  func.func @transform_5(%arg0: i32) -> (i32, i32) {
    %c0_i32 = arith.constant 0 : i32
    %c0_i32_0 = arith.constant 0 : i32
    %c0_i32_1 = arith.constant 0 : i32
    return %c0_i32, %c0_i32_0 : i32, i32
  }
  func.func @transform_6(%arg0: i32) -> (i32, i32) {
    %c0_i32 = arith.constant 0 : i32
    %c0_i32_0 = arith.constant 0 : i32
    %c0_i32_1 = arith.constant 0 : i32
    return %c0_i32, %c0_i32_0 : i32, i32
  }
  func.func @transform_7(%arg0: i32) -> (i32, i32) {
    %c0_i32 = arith.constant 0 : i32
    %c0_i32_0 = arith.constant 0 : i32
    %c0_i32_1 = arith.constant 0 : i32
    return %c0_i32, %c0_i32_0 : i32, i32
  }
  func.func @transform_8(%arg0: i32) -> (i32, i32) {
    %c0_i32 = arith.constant 0 : i32
    %c0_i32_0 = arith.constant 0 : i32
    %c0_i32_1 = arith.constant 0 : i32
    return %c0_i32, %c0_i32_0 : i32, i32
  }
  func.func @transform_9(%arg0: i32) -> (i32, i32, i32) {
    %c0_i32 = arith.constant 0 : i32
    %c0_i32_0 = arith.constant 0 : i32
    %c0_i32_1 = arith.constant 0 : i32
    return %arg0, %c0_i32, %c0_i32_0 : i32, i32, i32
  }
}

</mosaic_0001>

<llo_original>
// kernel: _lambda_.3
$region0: #{_lambda_.3}
  #allocation0 [shape = 'u32[]', space=smem, size = 0x4, offset = 0x4, fixed_abs, tag = 'smem constant byte address 0x4 - core index']
  #allocation1 [shape = 'u32[144,128]{1,0:T(1,128)}', space=vmem, size = 0x12000, scoped, tag = 'internal scratch']
  %s0 = inlined_call_operand.vmem [shape: bf16[2,16,24], index: 0, kind: input, shape index: {}]
  %s1 = inlined_call_operand.vmem [shape: bf16[16,80], index: 1, kind: input, shape index: {}]
  %s2 = inlined_call_operand.vmem [shape: f32[16,1], index: 2, kind: input, shape index: {}, may-alias: {2,5}]
  %s3 = inlined_call_operand.vmem [shape: f32[16,1], index: 3, kind: input, shape index: {}]
  %s4 = inlined_call_operand.vmem [shape: bf16[16,80], index: 4, kind: input, shape index: {}]
  %s5 = inlined_call_operand.vmem [shape: f32[16,1], index: 5, kind: input, shape index: {}, may-alias: {2,5}]
  %s6 = inlined_call_operand.vmem [shape: f32[16,1], index: 6, kind: input, shape index: {}]
  %s7 = inlined_call_operand.vmem [shape: bf16[16,16], index: 7, kind: input, shape index: {}]
  %s8 = inlined_call_operand.vmem [shape: f32[16,1], index: 8, kind: input, shape index: {}]
  %s9 = inlined_call_operand.hbm [shape: f32[2,16,16], index: 9, kind: output, shape index: {}]
  %s10 = sld [smem:[#allocation0]]
  $region69: #{_lambda_.3} parent=0
    _
  %s12 = ssub.s32 1, %s10
  %s13 = scalar_select 0, %s12, %s10
  $region1: #{_lambda_.3} parent=0
    #allocation2 [shape = 'u8[16384]{0}', space=vmem, size = 0x4000, scoped, tag = 'output window, operand 0']
    #allocation3 [shape = 's32[2]{0}', space=sflag, size = 0x8, scoped, tag = 'scoped memory for _lambda_.3']
    %14 = vsyncpa [#allocation3], 0
    %s15 = scalar_lea.sflag [#allocation3], 1
    %16 = vsyncpa %s15, 0
    loop: start=0, step=1, limit=4
    $region2: #{_lambda_.3} parent=1 // loop_pre_header
      _
    $region3: #{_lambda_.3} parent=1 // loop_header
      %s18 = sphi 0, %s22
      %p19 = scmp.ge.s32.totalorder %s18, 4
      %s28 = sphi 0, %s30
      %s31 = sphi 0, %s28
      %s32 = sphi 0, %s31
      %s48 = sphi 0, %s32
      %s52 = sphi 0, %s52
      %s54 = sphi 0, %s52
      %s55 = sphi 0, %s54
      %s69 = sphi 0, %s55
      %s73 = sphi 0, %s73
      %s75 = sphi 0, %s73
      %s76 = sphi 0, %s75
      %s90 = sphi 0, %s76
      %s94 = sphi 0, %s94
      %s96 = sphi 0, %s94
      %s97 = sphi 0, %s96
      %s111 = sphi 0, %s97
      %s115 = sphi 0, %s115
      %s117 = sphi 0, %s115
      %s118 = sphi 0, %s117
      %s132 = sphi 0, %s118
      %s136 = sphi 0, %s136
      %s138 = sphi 0, %s136
      %s139 = sphi 0, %s138
      %s153 = sphi 0, %s139
      %s157 = sphi 0, %s157
      %s159 = sphi 0, %s157
      %s160 = sphi 0, %s159
      %s174 = sphi 0, %s160
      %s178 = sphi 0, %s178
      %s180 = sphi 0, %s178
      %s181 = sphi 0, %s180
      %s195 = sphi 0, %s181
      %s199 = sphi 0, %s199
      %s201 = sphi 0, %s199
      %s202 = sphi 0, %s201
      %s216 = sphi 0, %s202
      %s222 = sphi 0, %s224
      %s225 = sphi 0, %s222
      %s226 = sphi 0, %s225
      %s242 = sphi 0, %s226
    $region4: #{_lambda_.3} parent=1 // loop_header_branch
      %21 = sbr.rel (%p19) target = $region8
    $region5: #{_lambda_.3} parent=1 // loop_body
      %s23 = ssub.s32 %s18, 1
      %s24 = ssub.s32 %s18, 2
      %s25 = sadd.s32 %s18, 1
      %s26 = ssub.s32 %s18, %s25
      %p27 = scmp.eq.s32.totalorder %s26, 0
      %s29 = sadd.s32 %s28, 1
      %s30 = scalar_select %p27, %s28, %s29
      %p33 = pneg %p27
      %p34 = scmp.eq.s32.totalorder %s18, 1
      %p35 = por %p33, %p34
      %p36 = scmp.ne.s32.totalorder %s28, %s31
      %p37 = scmp.eq.s32.totalorder %s18, 0
      %p38 = por %p36, %p37
      %p39 = scmp.ne.s32.totalorder %s28, %s31
      %p40 = scmp.eq.s32.totalorder %s23, 1
      %p41 = por %p39, %p40
      %p42 = scmp.ne.s32.totalorder %s31, %s32
      %p43 = scmp.eq.s32.totalorder %s23, 0
      %p44 = por %p42, %p43
      %p45 = scmp.ne.s32.totalorder %s31, %s32
      %p46 = scmp.eq.s32.totalorder %s24, 1
      %p47 = por %p45, %p46
      %p49 = scmp.ne.s32.totalorder %s32, %s48
      %p50 = scmp.eq.s32.totalorder %s24, 0
      %p51 = por %p49, %p50
      %s53 = sadd.s32 %s52, 1
      %p56 = scmp.eq.s32.totalorder %s18, 1
      %p57 = scmp.ne.s32.totalorder %s52, %s54
      %p58 = scmp.eq.s32.totalorder %s18, 0
      %p59 = por %p57, %p58
      %p60 = scmp.ne.s32.totalorder %s52, %s54
      %p61 = scmp.eq.s32.totalorder %s23, 1
      %p62 = por %p60, %p61
      %p63 = scmp.ne.s32.totalorder %s54, %s55
      %p64 = scmp.eq.s32.totalorder %s23, 0
      %p65 = por %p63, %p64
      %p66 = scmp.ne.s32.totalorder %s54, %s55
      %p67 = scmp.eq.s32.totalorder %s24, 1
      %p68 = por %p66, %p67
      %p70 = scmp.ne.s32.totalorder %s55, %s69
      %p71 = scmp.eq.s32.totalorder %s24, 0
      %p72 = por %p70, %p71
      %s74 = sadd.s32 %s73, 1
      %p77 = scmp.eq.s32.totalorder %s18, 1
      %p78 = scmp.ne.s32.totalorder %s73, %s75
      %p79 = scmp.eq.s32.totalorder %s18, 0
      %p80 = por %p78, %p79
      %p81 = scmp.ne.s32.totalorder %s73, %s75
      %p82 = scmp.eq.s32.totalorder %s23, 1
      %p83 = por %p81, %p82
      %p84 = scmp.ne.s32.totalorder %s75, %s76
      %p85 = scmp.eq.s32.totalorder %s23, 0
      %p86 = por %p84, %p85
      %p87 = scmp.ne.s32.totalorder %s75, %s76
      %p88 = scmp.eq.s32.totalorder %s24, 1
      %p89 = por %p87, %p88
      %p91 = scmp.ne.s32.totalorder %s76, %s90
      %p92 = scmp.eq.s32.totalorder %s24, 0
      %p93 = por %p91, %p92
      %s95 = sadd.s32 %s94, 1
      %p98 = scmp.eq.s32.totalorder %s18, 1
      %p99 = scmp.ne.s32.totalorder %s94, %s96
      %p100 = scmp.eq.s32.totalorder %s18, 0
      %p101 = por %p99, %p100
      %p102 = scmp.ne.s32.totalorder %s94, %s96
      %p103 = scmp.eq.s32.totalorder %s23, 1
      %p104 = por %p102, %p103
      %p105 = scmp.ne.s32.totalorder %s96, %s97
      %p106 = scmp.eq.s32.totalorder %s23, 0
      %p107 = por %p105, %p106
      %p108 = scmp.ne.s32.totalorder %s96, %s97
      %p109 = scmp.eq.s32.totalorder %s24, 1
      %p110 = por %p108, %p109
      %p112 = scmp.ne.s32.totalorder %s97, %s111
      %p113 = scmp.eq.s32.totalorder %s24, 0
      %p114 = por %p112, %p113
      %s116 = sadd.s32 %s115, 1
      %p119 = scmp.eq.s32.totalorder %s18, 1
      %p120 = scmp.ne.s32.totalorder %s115, %s117
      %p121 = scmp.eq.s32.totalorder %s18, 0
      %p122 = por %p120, %p121
      %p123 = scmp.ne.s32.totalorder %s115, %s117
      %p124 = scmp.eq.s32.totalorder %s23, 1
      %p125 = por %p123, %p124
      %p126 = scmp.ne.s32.totalorder %s117, %s118
      %p127 = scmp.eq.s32.totalorder %s23, 0
      %p128 = por %p126, %p127
      %p129 = scmp.ne.s32.totalorder %s117, %s118
      %p130 = scmp.eq.s32.totalorder %s24, 1
      %p131 = por %p129, %p130
      %p133 = scmp.ne.s32.totalorder %s118, %s132
      %p134 = scmp.eq.s32.totalorder %s24, 0
      %p135 = por %p133, %p134
      %s137 = sadd.s32 %s136, 1
      %p140 = scmp.eq.s32.totalorder %s18, 1
      %p141 = scmp.ne.s32.totalorder %s136, %s138
      %p142 = scmp.eq.s32.totalorder %s18, 0
      %p143 = por %p141, %p142
      %p144 = scmp.ne.s32.totalorder %s136, %s138
      %p145 = scmp.eq.s32.totalorder %s23, 1
      %p146 = por %p144, %p145
      %p147 = scmp.ne.s32.totalorder %s138, %s139
      %p148 = scmp.eq.s32.totalorder %s23, 0
      %p149 = por %p147, %p148
      %p150 = scmp.ne.s32.totalorder %s138, %s139
      %p151 = scmp.eq.s32.totalorder %s24, 1
      %p152 = por %p150, %p151
      %p154 = scmp.ne.s32.totalorder %s139, %s153
      %p155 = scmp.eq.s32.totalorder %s24, 0
      %p156 = por %p154, %p155
      %s158 = sadd.s32 %s157, 1
      %p161 = scmp.eq.s32.totalorder %s18, 1
      %p162 = scmp.ne.s32.totalorder %s157, %s159
      %p163 = scmp.eq.s32.totalorder %s18, 0
      %p164 = por %p162, %p163
      %p165 = scmp.ne.s32.totalorder %s157, %s159
      %p166 = scmp.eq.s32.totalorder %s23, 1
      %p167 = por %p165, %p166
      %p168 = scmp.ne.s32.totalorder %s159, %s160
      %p169 = scmp.eq.s32.totalorder %s23, 0
      %p170 = por %p168, %p169
      %p171 = scmp.ne.s32.totalorder %s159, %s160
      %p172 = scmp.eq.s32.totalorder %s24, 1
      %p173 = por %p171, %p172
      %p175 = scmp.ne.s32.totalorder %s160, %s174
      %p176 = scmp.eq.s32.totalorder %s24, 0
      %p177 = por %p175, %p176
      %s179 = sadd.s32 %s178, 1
      %p182 = scmp.eq.s32.totalorder %s18, 1
      %p183 = scmp.ne.s32.totalorder %s178, %s180
      %p184 = scmp.eq.s32.totalorder %s18, 0
      %p185 = por %p183, %p184
      %p186 = scmp.ne.s32.totalorder %s178, %s180
      %p187 = scmp.eq.s32.totalorder %s23, 1
      %p188 = por %p186, %p187
      %p189 = scmp.ne.s32.totalorder %s180, %s181
      %p190 = scmp.eq.s32.totalorder %s23, 0
      %p191 = por %p189, %p190
      %p192 = scmp.ne.s32.totalorder %s180, %s181
      %p193 = scmp.eq.s32.totalorder %s24, 1
      %p194 = por %p192, %p193
      %p196 = scmp.ne.s32.totalorder %s181, %s195
      %p197 = scmp.eq.s32.totalorder %s24, 0
      %p198 = por %p196, %p197
      %s200 = sadd.s32 %s199, 1
      %p203 = scmp.eq.s32.totalorder %s18, 1
      %p204 = scmp.ne.s32.totalorder %s199, %s201
      %p205 = scmp.eq.s32.totalorder %s18, 0
      %p206 = por %p204, %p205
      %p207 = scmp.ne.s32.totalorder %s199, %s201
      %p208 = scmp.eq.s32.totalorder %s23, 1
      %p209 = por %p207, %p208
      %p210 = scmp.ne.s32.totalorder %s201, %s202
      %p211 = scmp.eq.s32.totalorder %s23, 0
      %p212 = por %p210, %p211
      %p213 = scmp.ne.s32.totalorder %s201, %s202
      %p214 = scmp.eq.s32.totalorder %s24, 1
      %p215 = por %p213, %p214
      %p217 = scmp.ne.s32.totalorder %s202, %s216
      %p218 = scmp.eq.s32.totalorder %s24, 0
      %p219 = por %p217, %p218
      %s220 = ssub.s32 %s18, %s25
      %p221 = scmp.eq.s32.totalorder %s220, 0
      %s223 = sadd.s32 %s222, 1
      %s224 = scalar_select %p221, %s222, %s223
      %p227 = pneg %p221
      %p228 = scmp.eq.s32.totalorder %s18, 1
      %p229 = por %p227, %p228
      %p230 = scmp.ne.s32.totalorder %s222, %s225
      %p231 = scmp.eq.s32.totalorder %s18, 0
      %p232 = por %p230, %p231
      %p233 = scmp.ne.s32.totalorder %s222, %s225
      %p234 = scmp.eq.s32.totalorder %s23, 1
      %p235 = por %p233, %p234
      %p236 = scmp.ne.s32.totalorder %s225, %s226
      %p237 = scmp.eq.s32.totalorder %s23, 0
      %p238 = por %p236, %p237
      %p239 = scmp.ne.s32.totalorder %s225, %s226
      %p240 = scmp.eq.s32.totalorder %s24, 1
      %p241 = por %p239, %p240
      %p243 = scmp.ne.s32.totalorder %s226, %s242
      %p244 = scmp.eq.s32.totalorder %s24, 0
      %p245 = por %p243, %p244
      %p246 = scmp.le.s32.totalorder 1, %s18
      %p247 = scmp.lt.s32.totalorder %s18, 3
      %p248 = pnand %p246, %p247
      %p249 = pneg %p248
      // Predicated region
      $region9: #{_lambda_.3} parent=5 // pred_check
        _
      $region10: #{_lambda_.3} parent=5 // pred_check_branch
        %251 = sbr.rel (%p248) target = $region12
      $region11: #{_lambda_.3} parent=5 // pred_region
        %s252 = ssub.s32 %s18, 1
        // Predicated region
        $region13: #{_lambda_.3} parent=11 // pred_check
          %p253 = pneg %p65
        $region14: #{_lambda_.3} parent=11 // pred_check_branch
          %255 = sbr.rel (%p253) target = $region16
        $region15: #{_lambda_.3} parent=11 // pred_region
          _
        $region16: #{_lambda_.3} parent=11 // pred_fallthru
          _
        // Predicated region
        $region17: #{_lambda_.3} parent=11 // pred_check
          %p256 = pneg %p86
        $region18: #{_lambda_.3} parent=11 // pred_check_branch
          %258 = sbr.rel (%p256) target = $region20
        $region19: #{_lambda_.3} parent=11 // pred_region
          _
        $region20: #{_lambda_.3} parent=11 // pred_fallthru
          _
        // Predicated region
        $region21: #{_lambda_.3} parent=11 // pred_check
          %p259 = pneg %p107
        $region22: #{_lambda_.3} parent=11 // pred_check_branch
          %261 = sbr.rel (%p259) target = $region24
        $region23: #{_lambda_.3} parent=11 // pred_region
          _
        $region24: #{_lambda_.3} parent=11 // pred_fallthru
          _
        // Predicated region
        $region25: #{_lambda_.3} parent=11 // pred_check
          %p262 = pneg %p128
        $region26: #{_lambda_.3} parent=11 // pred_check_branch
          %264 = sbr.rel (%p262) target = $region28
        $region27: #{_lambda_.3} parent=11 // pred_region
          _
        $region28: #{_lambda_.3} parent=11 // pred_fallthru
          _
        // Predicated region
        $region29: #{_lambda_.3} parent=11 // pred_check
          %p265 = pneg %p149
        $region30: #{_lambda_.3} parent=11 // pred_check_branch
          %267 = sbr.rel (%p265) target = $region32
        $region31: #{_lambda_.3} parent=11 // pred_region
          _
        $region32: #{_lambda_.3} parent=11 // pred_fallthru
          _
        // Predicated region
        $region33: #{_lambda_.3} parent=11 // pred_check
          %p268 = pneg %p170
        $region34: #{_lambda_.3} parent=11 // pred_check_branch
          %270 = sbr.rel (%p268) target = $region36
        $region35: #{_lambda_.3} parent=11 // pred_region
          _
        $region36: #{_lambda_.3} parent=11 // pred_fallthru
          _
        // Predicated region
        $region37: #{_lambda_.3} parent=11 // pred_check
          %p271 = pneg %p191
        $region38: #{_lambda_.3} parent=11 // pred_check_branch
          %273 = sbr.rel (%p271) target = $region40
        $region39: #{_lambda_.3} parent=11 // pred_region
          _
        $region40: #{_lambda_.3} parent=11 // pred_fallthru
          _
        // Predicated region
        $region41: #{_lambda_.3} parent=11 // pred_check
          %p274 = pneg %p212
        $region42: #{_lambda_.3} parent=11 // pred_check_branch
          %276 = sbr.rel (%p274) target = $region44
        $region43: #{_lambda_.3} parent=11 // pred_region
          _
        $region44: #{_lambda_.3} parent=11 // pred_fallthru
          _
      $region12: #{_lambda_.3} parent=5 // pred_fallthru
        _
      %p277 = scmp.lt.s32.totalorder %s18, 2
      // Predicated region
      $region45: #{_lambda_.3} parent=5 // pred_check
        %p278 = pneg %p277
      $region46: #{_lambda_.3} parent=5 // pred_check_branch
        %280 = sbr.rel (%p278) target = $region48
      $region47: #{_lambda_.3} parent=5 // pred_region
        // Predicated region
        $region49: #{_lambda_.3} parent=47 // pred_check
          %p281 = pneg %p38
        $region50: #{_lambda_.3} parent=47 // pred_check_branch
          %283 = sbr.rel (%p281) target = $region52
        $region51: #{_lambda_.3} parent=47 // pred_region
          %p284 = scmp.lt.s32.totalorder %s18, 1
          %s285 = scalar_select %p284, %s18, 1
          %s286 = smul.addr %s285, 2
          %s287 = smul.addr %s286, 4
          %s288 = scalar_lea.vmem %s0, %s287
        $region52: #{_lambda_.3} parent=47 // pred_fallthru
          _
      $region48: #{_lambda_.3} parent=5 // pred_fallthru
        _
      %p289 = scmp.le.s32.totalorder 1, %s18
      %p290 = scmp.lt.s32.totalorder %s18, 3
      %p291 = pnand %p289, %p290
      %p292 = pneg %p291
      // Predicated region
      $region53: #{_lambda_.3} parent=5 // pred_check
        _
      $region54: #{_lambda_.3} parent=5 // pred_check_branch
        %294 = sbr.rel (%p291) target = $region56
      $region55: #{_lambda_.3} parent=5 // pred_region
        %s295 = ssub.s32 %s18, 1
        %p296 = scmp.lt.s32.totalorder %s23, 1
        %s297 = scalar_select %p296, %s23, 1
        %s298 = smul.addr %s297, 2
        %s299 = smul.addr %s298, 4
        %s300 = scalar_lea.vmem %s0, %s299
        %p301 = pneg %p44
        %p302 = pneg %p41
        %p303 = pneg %p65
        %p304 = pneg %p62
        %p305 = pneg %p86
        %p306 = pneg %p83
        %p307 = pneg %p107
        %p308 = pneg %p104
        %p309 = pneg %p128
        %p310 = pneg %p125
        %p311 = pneg %p149
        %p312 = pneg %p146
        %p313 = pneg %p170
        %p314 = pneg %p167
        %p315 = pneg %p191
        %p316 = pneg %p188
        %p317 = pneg %p212
        %p318 = pneg %p209
        %p319 = pneg %p238
        %p320 = pneg %p235
        %s321 = sand.u32 %s225, 1
        %s322 = scalar_lea.sflag [#allocation3], %s321
        %s323 = sand.u32 %s225, 1
        %s324 = smul.addr %s323, 16
        %s325 = scalar_lea.vmem [#allocation2], %s324
        %p326 = scmp.lt.s32.totalorder %s23, 1
        %s327 = scalar_select %p326, %s23, 1
        %s328 = smul.addr %s327, 2
        %s329 = smul.addr %s328, 4
        %s330 = scalar_lea.vmem %s0, %s329
        %v332 = vld [vmem:[%s330] sm:$0xf]
        %v333 = vld [vmem:[%s330 + $0x4] sm:$0xf]
        %v336 = vunpack.c.l.b16 %v332
        %v337 = vunpack.c.l.b16 %v333
        %v338 = vpack.c.b16 %v337, %v336
        %340 = vrot.lane.b32.xlu0 %v338, 126
        %v341 = vpop.permute.xlu0 %340
        %343 = vrot.lane.b32.xlu0 %v338, 124
        %v344 = vpop.permute.xlu0 %343
        %346 = vrot.lane.b32.xlu0 %v338, 122
        %v347 = vpop.permute.xlu0 %346
        %349 = vrot.lane.b32.xlu0 %v338, 120
        %v350 = vpop.permute.xlu0 %349
        %v352 = vld [vmem:[%s1] sm:$0xf]
        %v353 = vld [vmem:[%s1 + $0x4] sm:$0xf]
        %v356 = vunpack.c.l.b16 %v352
        %v357 = vunpack.c.l.b16 %v353
        %v358 = vpack.c.b16 %v357, %v356
        %vm359 = vcmask 654336
        %v361 = vsel %vm359, %v358, 0
        %363 = vmatprep.subr.bf16.mxu0 0
        %364 = vmatpush1.bf16.msra.mxu0 %v338
        %365 = vmatprep.subr.bf16.mxu0 0
        %366 = vmatpush1.bf16.msra.mxu0 %v341
        %367 = vmatprep.subr.bf16.mxu0 0
        %368 = vmatpush1.bf16.msra.mxu0 %v344
        %369 = vmatprep.subr.bf16.mxu0 0
        %370 = vmatpush1.bf16.msra.mxu0 %v347
        %371 = vmatprep.subr.bf16.mxu0 0
        %372 = vmatpush1.bf16.msra.mxu0 %v350
        %373 = vmatprep.subr.bf16.mxu0 0
        %374 = vmatpush1.bf16.msra.mxu0 0
        %375 = vmatprep.subr.bf16.mxu0 0
        %376 = vmatpush1.bf16.msra.mxu0 0
        %377 = vmatprep.subr.bf16.mxu0 0
        %378 = vmatpush1.bf16.msra.mxu0 0
        %379 = vmatprep.subr.bf16.mxu0 0
        %380 = vmatpush1.bf16.msra.mxu0 0
        %381 = vmatprep.subr.bf16.mxu0 0
        %382 = vmatpush1.bf16.msra.mxu0 0
        %383 = vmatprep.subr.bf16.mxu0 0
        %384 = vmatpush1.bf16.msra.mxu0 0
        %385 = vmatprep.subr.bf16.mxu0 0
        %386 = vmatpush1.bf16.msra.mxu0 0
        %387 = vmatprep.subr.bf16.mxu0 0
        %388 = vmatpush1.bf16.msra.mxu0 0
        %389 = vmatprep.subr.bf16.mxu0 0
        %390 = vmatpush1.bf16.msra.mxu0 0
        %391 = vmatprep.subr.bf16.mxu0 0
        %392 = vmatpush1.bf16.msra.mxu0 0
        %393 = vmatprep.subr.bf16.mxu0 0
        %394 = vmatpush1.bf16.msra.mxu0 0
        %395 = vmatprep.mubr.bf16.mxu0 0
        %396 = vmatmul.mubr.bf16.gmra.mrb[0].mxu0 %v361
        %v397 = vpop.f32.mrb[0].mxu0
        %v398 = vadd.f32 0.0, %v397
        %v399 = vpop.f32.mrb[0].mxu0
        %v400 = vpop.f32.mrb[0].mxu0
        %v401 = vadd.f32 0.0, %v400
        %v402 = vpop.f32.mrb[0].mxu0
        %403 = vdwg.mxu0
        %v404 = vld [vmem:[%s2] sm:$0xff]
        %v405 = vld [vmem:[%s2 + $0x8] sm:$0xff]
        %407 = vset.pattern.permute.xlu0 0
        %408 = vperm.xlu0 %407, %v404
        %v409 = vpop.permute.xlu0 %408
        %412 = vset.pattern.permute.xlu0 0
        %413 = vperm.xlu0 %412, %v405
        %v414 = vpop.permute.xlu0 %413
        %v416 = vmul.f32 %v398, %v409
        %v417 = vmul.f32 %v401, %v414
        %v418 = vld [vmem:[%s3] sm:$0xff]
        %v419 = vld [vmem:[%s3 + $0x8] sm:$0xff]
        %421 = vset.pattern.permute.xlu0 0
        %422 = vperm.xlu0 %421, %v418
        %v423 = vpop.permute.xlu0 %422
        %426 = vset.pattern.permute.xlu0 0
        %427 = vperm.xlu0 %426, %v419
        %v428 = vpop.permute.xlu0 %427
        %v430 = vadd.f32 %v416, %v423
        %v431 = vadd.f32 %v417, %v428
        %v432 = vmax.f32 %v430, 0.0
        %v433 = vmax.f32 %v431, 0.0
        %v434 = vpack.c.bf16 %v433, %v432
        %436 = vrot.lane.b32.xlu0 %v434, 4
        %v437 = vpop.permute.xlu0 %436
        %vm438 = vcmask 31744
        %v441 = vsel %vm438, 0, %v437
        %vm442 = vcmask 162816
        %v443 = vsel %vm442, %v441, 0
        %446 = vrot.lane.b32.xlu0 %v443, 126
        %v447 = vpop.permute.xlu0 %446
        %449 = vrot.lane.b32.xlu0 %v443, 124
        %v450 = vpop.permute.xlu0 %449
        %452 = vrot.lane.b32.xlu0 %v443, 122
        %v453 = vpop.permute.xlu0 %452
        %455 = vrot.lane.b32.xlu0 %v443, 120
        %v456 = vpop.permute.xlu0 %455
        %v458 = vld [vmem:[%s4] sm:$0xf]
        %v459 = vld [vmem:[%s4 + $0x4] sm:$0xf]
        %v462 = vunpack.c.l.b16 %v458
        %v463 = vunpack.c.l.b16 %v459
        %v464 = vpack.c.b16 %v463, %v462
        %v466 = vsel %vm359, %v464, 0
        %468 = vmatprep.subr.bf16.mxu0 0
        %469 = vmatpush1.bf16.msra.mxu0 %v443
        %470 = vmatprep.subr.bf16.mxu0 0
        %471 = vmatpush1.bf16.msra.mxu0 %v447
        %472 = vmatprep.subr.bf16.mxu0 0
        %473 = vmatpush1.bf16.msra.mxu0 %v450
        %474 = vmatprep.subr.bf16.mxu0 0
        %475 = vmatpush1.bf16.msra.mxu0 %v453
        %476 = vmatprep.subr.bf16.mxu0 0
        %477 = vmatpush1.bf16.msra.mxu0 %v456
        %478 = vmatprep.subr.bf16.mxu0 0
        %479 = vmatpush1.bf16.msra.mxu0 0
        %480 = vmatprep.subr.bf16.mxu0 0
        %481 = vmatpush1.bf16.msra.mxu0 0
        %482 = vmatprep.subr.bf16.mxu0 0
        %483 = vmatpush1.bf16.msra.mxu0 0
        %484 = vmatprep.subr.bf16.mxu0 0
        %485 = vmatpush1.bf16.msra.mxu0 0
        %486 = vmatprep.subr.bf16.mxu0 0
        %487 = vmatpush1.bf16.msra.mxu0 0
        %488 = vmatprep.subr.bf16.mxu0 0
        %489 = vmatpush1.bf16.msra.mxu0 0
        %490 = vmatprep.subr.bf16.mxu0 0
        %491 = vmatpush1.bf16.msra.mxu0 0
        %492 = vmatprep.subr.bf16.mxu0 0
        %493 = vmatpush1.bf16.msra.mxu0 0
        %494 = vmatprep.subr.bf16.mxu0 0
        %495 = vmatpush1.bf16.msra.mxu0 0
        %496 = vmatprep.subr.bf16.mxu0 0
        %497 = vmatpush1.bf16.msra.mxu0 0
        %498 = vmatprep.subr.bf16.mxu0 0
        %499 = vmatpush1.bf16.msra.mxu0 0
        %500 = vmatprep.mubr.bf16.mxu0 0
        %501 = vmatmul.mubr.bf16.gmra.mrb[0].mxu0 %v466
        %v502 = vpop.f32.mrb[0].mxu0
        %v503 = vadd.f32 0.0, %v502
        %v504 = vpop.f32.mrb[0].mxu0
        %v505 = vpop.f32.mrb[0].mxu0
        %v506 = vadd.f32 0.0, %v505
        %v507 = vpop.f32.mrb[0].mxu0
        %508 = vdwg.mxu0
        %v509 = vld [vmem:[%s5] sm:$0xff]
        %v510 = vld [vmem:[%s5 + $0x8] sm:$0xff]
        %512 = vset.pattern.permute.xlu0 0
        %513 = vperm.xlu0 %512, %v509
        %v514 = vpop.permute.xlu0 %513
        %517 = vset.pattern.permute.xlu0 0
        %518 = vperm.xlu0 %517, %v510
        %v519 = vpop.permute.xlu0 %518
        %v521 = vmul.f32 %v503, %v514
        %v522 = vmul.f32 %v506, %v519
        %v523 = vld [vmem:[%s6] sm:$0xff]
        %v524 = vld [vmem:[%s6 + $0x8] sm:$0xff]
        %526 = vset.pattern.permute.xlu0 0
        %527 = vperm.xlu0 %526, %v523
        %v528 = vpop.permute.xlu0 %527
        %531 = vset.pattern.permute.xlu0 0
        %532 = vperm.xlu0 %531, %v524
        %v533 = vpop.permute.xlu0 %532
        %v535 = vadd.f32 %v521, %v528
        %v536 = vadd.f32 %v522, %v533
        %v537 = vld [vmem:[%s7] sm:$0xf]
        %v538 = vld [vmem:[%s7 + $0x4] sm:$0xf]
        %v539 = vld [vmem:[%s8] sm:$0xff]
        %v540 = vld [vmem:[%s8 + $0x8] sm:$0xff]
        %542 = vset.pattern.permute.xlu0 0
        %543 = vperm.xlu0 %542, %v539
        %v544 = vpop.permute.xlu0 %543
        %547 = vset.pattern.permute.xlu0 0
        %548 = vperm.xlu0 %547, %v540
        %v549 = vpop.permute.xlu0 %548
        %v553 = vunpack.c.l.b16 %v537
        %v554 = vunpack.c.l.b16 %v538
        %v555 = vpack.c.b16 %v554, %v553
        %vm556 = vcmask 130048
        %v558 = vsel %vm556, %v555, 0
        %560 = vmatprep.subr.bf16.mxu0 0
        %561 = vmatpush1.bf16.msra.mxu0 %v344
        %562 = vmatprep.subr.bf16.mxu0 0
        %563 = vmatpush1.bf16.msra.mxu0 0
        %564 = vmatprep.subr.bf16.mxu0 0
        %565 = vmatpush1.bf16.msra.mxu0 0
        %566 = vmatprep.subr.bf16.mxu0 0
        %567 = vmatpush1.bf16.msra.mxu0 0
        %568 = vmatprep.subr.bf16.mxu0 0
        %569 = vmatpush1.bf16.msra.mxu0 0
        %570 = vmatprep.subr.bf16.mxu0 0
        %571 = vmatpush1.bf16.msra.mxu0 0
        %572 = vmatprep.subr.bf16.mxu0 0
        %573 = vmatpush1.bf16.msra.mxu0 0
        %574 = vmatprep.subr.bf16.mxu0 0
        %575 = vmatpush1.bf16.msra.mxu0 0
        %576 = vmatprep.subr.bf16.mxu0 0
        %577 = vmatpush1.bf16.msra.mxu0 0
        %578 = vmatprep.subr.bf16.mxu0 0
        %579 = vmatpush1.bf16.msra.mxu0 0
        %580 = vmatprep.subr.bf16.mxu0 0
        %581 = vmatpush1.bf16.msra.mxu0 0
        %582 = vmatprep.subr.bf16.mxu0 0
        %583 = vmatpush1.bf16.msra.mxu0 0
        %584 = vmatprep.subr.bf16.mxu0 0
        %585 = vmatpush1.bf16.msra.mxu0 0
        %586 = vmatprep.subr.bf16.mxu0 0
        %587 = vmatpush1.bf16.msra.mxu0 0
        %588 = vmatprep.subr.bf16.mxu0 0
        %589 = vmatpush1.bf16.msra.mxu0 0
        %590 = vmatprep.subr.bf16.mxu0 0
        %591 = vmatpush1.bf16.msra.mxu0 0
        %592 = vmatprep.mubr.bf16.mxu0 0
        %593 = vmatmul.mubr.bf16.gmra.mrb[0].mxu0 %v558
        %v594 = vpop.f32.mrb[0].mxu0
        %v595 = vadd.f32 %v544, %v594
        %v596 = vpop.f32.mrb[0].mxu0
        %v597 = vpop.f32.mrb[0].mxu0
        %v598 = vadd.f32 %v549, %v597
        %v599 = vpop.f32.mrb[0].mxu0
        %600 = vdwg.mxu0
        %v601 = vadd.f32 %v535, %v595
        %v602 = vadd.f32 %v536, %v598
        %v603 = vmax.f32 %v601, 0.0
        %v604 = vmax.f32 %v602, 0.0
        %605 = vst.msk [vmem:[%s325] sm:$0xff] %vm556, %v603
        %606 = vst.msk [vmem:[%s325 + $0x8] sm:$0xff] %vm556, %v604
        %s607 = sand.u32 %s225, 1
        %s608 = scalar_lea.sflag [#allocation3], %s607
        %s609 = sand.u32 %s225, 1
        %s610 = smul.addr %s609, 16
        %s611 = scalar_lea.vmem [#allocation2], %s610
        // Predicated region
        $region57: #{_lambda_.3} parent=55 // pred_check
          %p612 = pneg %p235
        $region58: #{_lambda_.3} parent=55 // pred_check_branch
          %614 = sbr.rel (%p612) target = $region60
        $region59: #{_lambda_.3} parent=55 // pred_region
          %s616 = ssub.s32 256, 256
          %617 = vsyncadd %s608, %s616
          %s618 = smul.addr %s23, 2
          %s619 = smul.addr %s618, 128
          %s620 = scalar_lea.hbm %s9, %s619
          %s621 = sshll.u32 %s611, 4
          %s622 = int_to_ptr.vmem [resolvable:$true] %s621
          %627 = dma.vmem_to_hbm [thread:$0]  %s622, 256, %s620, %s608, 128, 128, 8
        $region60: #{_lambda_.3} parent=55 // pred_fallthru
          _
      $region56: #{_lambda_.3} parent=5 // pred_fallthru
        _
      %p628 = scmp.le.s32.totalorder 2, %s18
      // Predicated region
      $region61: #{_lambda_.3} parent=5 // pred_check
        %p629 = pneg %p628
      $region62: #{_lambda_.3} parent=5 // pred_check_branch
        %631 = sbr.rel (%p629) target = $region64
      $region63: #{_lambda_.3} parent=5 // pred_region
        %s632 = ssub.s32 %s18, 2
        // Predicated region
        $region65: #{_lambda_.3} parent=63 // pred_check
          %p633 = pneg %p241
        $region66: #{_lambda_.3} parent=63 // pred_check_branch
          %635 = sbr.rel (%p633) target = $region68
        $region67: #{_lambda_.3} parent=63 // pred_region
          %s636 = sand.u32 %s226, 1
          %s637 = scalar_lea.sflag [#allocation3], %s636
          %s638 = sand.u32 %s226, 1
          %s639 = smul.addr %s638, 16
          %s640 = scalar_lea.vmem [#allocation2], %s639
          %641 = dma.done %s637, 256
        $region68: #{_lambda_.3} parent=63 // pred_fallthru
          _
      $region64: #{_lambda_.3} parent=5 // pred_fallthru
        _
    $region6: #{_lambda_.3} parent=1 // loop_footer
      %s22 = sadd.s32 1, %s18
    $region7: #{_lambda_.3} parent=1 // loop_footer_branch
      %17 = sbr.rel target = $region3
    $region8: #{_lambda_.3} parent=1 // loop_exit
      _
    %642 = vsyncpa [#allocation3], 1
    %s643 = scalar_lea.sflag [#allocation3], 1
    %644 = vsyncpa %s643, 1

// kernel: _lambda_.2
$region0: #{_lambda_.2}
  #allocation0 [shape = 'u32[]', space=smem, size = 0x4, offset = 0x4, fixed_abs, tag = 'smem constant byte address 0x4 - core index']
  #allocation1 [shape = 'u32[144,128]{1,0:T(1,128)}', space=vmem, size = 0x12000, scoped, tag = 'internal scratch']
  %s0 = inlined_call_operand.vmem [shape: bf16[2,8,20], index: 0, kind: input, shape index: {}]
  %s1 = inlined_call_operand.vmem [shape: bf16[16,40], index: 1, kind: input, shape index: {}]
  %s2 = inlined_call_operand.vmem [shape: f32[16,1], index: 2, kind: input, shape index: {}, may-alias: {2,5}]
  %s3 = inlined_call_operand.vmem [shape: f32[16,1], index: 3, kind: input, shape index: {}]
  %s4 = inlined_call_operand.vmem [shape: bf16[16,80], index: 4, kind: input, shape index: {}]
  %s5 = inlined_call_operand.vmem [shape: f32[16,1], index: 5, kind: input, shape index: {}, may-alias: {2,5}]
  %s6 = inlined_call_operand.vmem [shape: f32[16,1], index: 6, kind: input, shape index: {}]
  %s7 = inlined_call_operand.vmem [shape: bf16[16,8], index: 7, kind: input, shape index: {}]
  %s8 = inlined_call_operand.vmem [shape: f32[16,1], index: 8, kind: input, shape index: {}]
  %s9 = inlined_call_operand.vmem [shape: bf16[2,16,24], index: 9, kind: output, shape index: {}]
  %s10 = sld [smem:[#allocation0]]
  $region69: #{_lambda_.2} parent=0
    _
  %s12 = ssub.s32 1, %s10
  %s13 = scalar_select 0, %s12, %s10
  loop: start=0, step=1, limit=4
  $region2: #{_lambda_.2} parent=0 // loop_pre_header
    _
  $region3: #{_lambda_.2} parent=0 // loop_header
    %s15 = sphi 0, %s19
    %p16 = scmp.ge.s32.totalorder %s15, 4
    %s25 = sphi 0, %s27
    %s28 = sphi 0, %s25
    %s29 = sphi 0, %s28
    %s45 = sphi 0, %s29
    %s49 = sphi 0, %s49
    %s51 = sphi 0, %s49
    %s52 = sphi 0, %s51
    %s66 = sphi 0, %s52
    %s70 = sphi 0, %s70
    %s72 = sphi 0, %s70
    %s73 = sphi 0, %s72
    %s87 = sphi 0, %s73
    %s91 = sphi 0, %s91
    %s93 = sphi 0, %s91
    %s94 = sphi 0, %s93
    %s108 = sphi 0, %s94
    %s112 = sphi 0, %s112
    %s114 = sphi 0, %s112
    %s115 = sphi 0, %s114
    %s129 = sphi 0, %s115
    %s133 = sphi 0, %s133
    %s135 = sphi 0, %s133
    %s136 = sphi 0, %s135
    %s150 = sphi 0, %s136
    %s154 = sphi 0, %s154
    %s156 = sphi 0, %s154
    %s157 = sphi 0, %s156
    %s171 = sphi 0, %s157
    %s175 = sphi 0, %s175
    %s177 = sphi 0, %s175
    %s178 = sphi 0, %s177
    %s192 = sphi 0, %s178
    %s196 = sphi 0, %s196
    %s198 = sphi 0, %s196
    %s199 = sphi 0, %s198
    %s213 = sphi 0, %s199
    %s219 = sphi 0, %s221
    %s222 = sphi 0, %s219
    %s223 = sphi 0, %s222
    %s239 = sphi 0, %s223
  $region4: #{_lambda_.2} parent=0 // loop_header_branch
    %18 = sbr.rel (%p16) target = $region8
  $region5: #{_lambda_.2} parent=0 // loop_body
    %s20 = ssub.s32 %s15, 1
    %s21 = ssub.s32 %s15, 2
    %s22 = sadd.s32 %s15, 1
    %s23 = ssub.s32 %s15, %s22
    %p24 = scmp.eq.s32.totalorder %s23, 0
    %s26 = sadd.s32 %s25, 1
    %s27 = scalar_select %p24, %s25, %s26
    %p30 = pneg %p24
    %p31 = scmp.eq.s32.totalorder %s15, 1
    %p32 = por %p30, %p31
    %p33 = scmp.ne.s32.totalorder %s25, %s28
    %p34 = scmp.eq.s32.totalorder %s15, 0
    %p35 = por %p33, %p34
    %p36 = scmp.ne.s32.totalorder %s25, %s28
    %p37 = scmp.eq.s32.totalorder %s20, 1
    %p38 = por %p36, %p37
    %p39 = scmp.ne.s32.totalorder %s28, %s29
    %p40 = scmp.eq.s32.totalorder %s20, 0
    %p41 = por %p39, %p40
    %p42 = scmp.ne.s32.totalorder %s28, %s29
    %p43 = scmp.eq.s32.totalorder %s21, 1
    %p44 = por %p42, %p43
    %p46 = scmp.ne.s32.totalorder %s29, %s45
    %p47 = scmp.eq.s32.totalorder %s21, 0
    %p48 = por %p46, %p47
    %s50 = sadd.s32 %s49, 1
    %p53 = scmp.eq.s32.totalorder %s15, 1
    %p54 = scmp.ne.s32.totalorder %s49, %s51
    %p55 = scmp.eq.s32.totalorder %s15, 0
    %p56 = por %p54, %p55
    %p57 = scmp.ne.s32.totalorder %s49, %s51
    %p58 = scmp.eq.s32.totalorder %s20, 1
    %p59 = por %p57, %p58
    %p60 = scmp.ne.s32.totalorder %s51, %s52
    %p61 = scmp.eq.s32.totalorder %s20, 0
    %p62 = por %p60, %p61
    %p63 = scmp.ne.s32.totalorder %s51, %s52
    %p64 = scmp.eq.s32.totalorder %s21, 1
    %p65 = por %p63, %p64
    %p67 = scmp.ne.s32.totalorder %s52, %s66
    %p68 = scmp.eq.s32.totalorder %s21, 0
    %p69 = por %p67, %p68
    %s71 = sadd.s32 %s70, 1
    %p74 = scmp.eq.s32.totalorder %s15, 1
    %p75 = scmp.ne.s32.totalorder %s70, %s72
    %p76 = scmp.eq.s32.totalorder %s15, 0
    %p77 = por %p75, %p76
    %p78 = scmp.ne.s32.totalorder %s70, %s72
    %p79 = scmp.eq.s32.totalorder %s20, 1
    %p80 = por %p78, %p79
    %p81 = scmp.ne.s32.totalorder %s72, %s73
    %p82 = scmp.eq.s32.totalorder %s20, 0
    %p83 = por %p81, %p82
    %p84 = scmp.ne.s32.totalorder %s72, %s73
    %p85 = scmp.eq.s32.totalorder %s21, 1
    %p86 = por %p84, %p85
    %p88 = scmp.ne.s32.totalorder %s73, %s87
    %p89 = scmp.eq.s32.totalorder %s21, 0
    %p90 = por %p88, %p89
    %s92 = sadd.s32 %s91, 1
    %p95 = scmp.eq.s32.totalorder %s15, 1
    %p96 = scmp.ne.s32.totalorder %s91, %s93
    %p97 = scmp.eq.s32.totalorder %s15, 0
    %p98 = por %p96, %p97
    %p99 = scmp.ne.s32.totalorder %s91, %s93
    %p100 = scmp.eq.s32.totalorder %s20, 1
    %p101 = por %p99, %p100
    %p102 = scmp.ne.s32.totalorder %s93, %s94
    %p103 = scmp.eq.s32.totalorder %s20, 0
    %p104 = por %p102, %p103
    %p105 = scmp.ne.s32.totalorder %s93, %s94
    %p106 = scmp.eq.s32.totalorder %s21, 1
    %p107 = por %p105, %p106
    %p109 = scmp.ne.s32.totalorder %s94, %s108
    %p110 = scmp.eq.s32.totalorder %s21, 0
    %p111 = por %p109, %p110
    %s113 = sadd.s32 %s112, 1
    %p116 = scmp.eq.s32.totalorder %s15, 1
    %p117 = scmp.ne.s32.totalorder %s112, %s114
    %p118 = scmp.eq.s32.totalorder %s15, 0
    %p119 = por %p117, %p118
    %p120 = scmp.ne.s32.totalorder %s112, %s114
    %p121 = scmp.eq.s32.totalorder %s20, 1
    %p122 = por %p120, %p121
    %p123 = scmp.ne.s32.totalorder %s114, %s115
    %p124 = scmp.eq.s32.totalorder %s20, 0
    %p125 = por %p123, %p124
    %p126 = scmp.ne.s32.totalorder %s114, %s115
    %p127 = scmp.eq.s32.totalorder %s21, 1
    %p128 = por %p126, %p127
    %p130 = scmp.ne.s32.totalorder %s115, %s129
    %p131 = scmp.eq.s32.totalorder %s21, 0
    %p132 = por %p130, %p131
    %s134 = sadd.s32 %s133, 1
    %p137 = scmp.eq.s32.totalorder %s15, 1
    %p138 = scmp.ne.s32.totalorder %s133, %s135
    %p139 = scmp.eq.s32.totalorder %s15, 0
    %p140 = por %p138, %p139
    %p141 = scmp.ne.s32.totalorder %s133, %s135
    %p142 = scmp.eq.s32.totalorder %s20, 1
    %p143 = por %p141, %p142
    %p144 = scmp.ne.s32.totalorder %s135, %s136
    %p145 = scmp.eq.s32.totalorder %s20, 0
    %p146 = por %p144, %p145
    %p147 = scmp.ne.s32.totalorder %s135, %s136
    %p148 = scmp.eq.s32.totalorder %s21, 1
    %p149 = por %p147, %p148
    %p151 = scmp.ne.s32.totalorder %s136, %s150
    %p152 = scmp.eq.s32.totalorder %s21, 0
    %p153 = por %p151, %p152
    %s155 = sadd.s32 %s154, 1
    %p158 = scmp.eq.s32.totalorder %s15, 1
    %p159 = scmp.ne.s32.totalorder %s154, %s156
    %p160 = scmp.eq.s32.totalorder %s15, 0
    %p161 = por %p159, %p160
    %p162 = scmp.ne.s32.totalorder %s154, %s156
    %p163 = scmp.eq.s32.totalorder %s20, 1
    %p164 = por %p162, %p163
    %p165 = scmp.ne.s32.totalorder %s156, %s157
    %p166 = scmp.eq.s32.totalorder %s20, 0
    %p167 = por %p165, %p166
    %p168 = scmp.ne.s32.totalorder %s156, %s157
    %p169 = scmp.eq.s32.totalorder %s21, 1
    %p170 = por %p168, %p169
    %p172 = scmp.ne.s32.totalorder %s157, %s171
    %p173 = scmp.eq.s32.totalorder %s21, 0
    %p174 = por %p172, %p173
    %s176 = sadd.s32 %s175, 1
    %p179 = scmp.eq.s32.totalorder %s15, 1
    %p180 = scmp.ne.s32.totalorder %s175, %s177
    %p181 = scmp.eq.s32.totalorder %s15, 0
    %p182 = por %p180, %p181
    %p183 = scmp.ne.s32.totalorder %s175, %s177
    %p184 = scmp.eq.s32.totalorder %s20, 1
    %p185 = por %p183, %p184
    %p186 = scmp.ne.s32.totalorder %s177, %s178
    %p187 = scmp.eq.s32.totalorder %s20, 0
    %p188 = por %p186, %p187
    %p189 = scmp.ne.s32.totalorder %s177, %s178
    %p190 = scmp.eq.s32.totalorder %s21, 1
    %p191 = por %p189, %p190
    %p193 = scmp.ne.s32.totalorder %s178, %s192
    %p194 = scmp.eq.s32.totalorder %s21, 0
    %p195 = por %p193, %p194
    %s197 = sadd.s32 %s196, 1
    %p200 = scmp.eq.s32.totalorder %s15, 1
    %p201 = scmp.ne.s32.totalorder %s196, %s198
    %p202 = scmp.eq.s32.totalorder %s15, 0
    %p203 = por %p201, %p202
    %p204 = scmp.ne.s32.totalorder %s196, %s198
    %p205 = scmp.eq.s32.totalorder %s20, 1
    %p206 = por %p204, %p205
    %p207 = scmp.ne.s32.totalorder %s198, %s199
    %p208 = scmp.eq.s32.totalorder %s20, 0
    %p209 = por %p207, %p208
    %p210 = scmp.ne.s32.totalorder %s198, %s199
    %p211 = scmp.eq.s32.totalorder %s21, 1
    %p212 = por %p210, %p211
    %p214 = scmp.ne.s32.totalorder %s199, %s213
    %p215 = scmp.eq.s32.totalorder %s21, 0
    %p216 = por %p214, %p215
    %s217 = ssub.s32 %s15, %s22
    %p218 = scmp.eq.s32.totalorder %s217, 0
    %s220 = sadd.s32 %s219, 1
    %s221 = scalar_select %p218, %s219, %s220
    %p224 = pneg %p218
    %p225 = scmp.eq.s32.totalorder %s15, 1
    %p226 = por %p224, %p225
    %p227 = scmp.ne.s32.totalorder %s219, %s222
    %p228 = scmp.eq.s32.totalorder %s15, 0
    %p229 = por %p227, %p228
    %p230 = scmp.ne.s32.totalorder %s219, %s222
    %p231 = scmp.eq.s32.totalorder %s20, 1
    %p232 = por %p230, %p231
    %p233 = scmp.ne.s32.totalorder %s222, %s223
    %p234 = scmp.eq.s32.totalorder %s20, 0
    %p235 = por %p233, %p234
    %p236 = scmp.ne.s32.totalorder %s222, %s223
    %p237 = scmp.eq.s32.totalorder %s21, 1
    %p238 = por %p236, %p237
    %p240 = scmp.ne.s32.totalorder %s223, %s239
    %p241 = scmp.eq.s32.totalorder %s21, 0
    %p242 = por %p240, %p241
    %p243 = scmp.le.s32.totalorder 1, %s15
    %p244 = scmp.lt.s32.totalorder %s15, 3
    %p245 = pnand %p243, %p244
    %p246 = pneg %p245
    // Predicated region
    $region9: #{_lambda_.2} parent=5 // pred_check
      _
    $region10: #{_lambda_.2} parent=5 // pred_check_branch
      %248 = sbr.rel (%p245) target = $region12
    $region11: #{_lambda_.2} parent=5 // pred_region
      %s249 = ssub.s32 %s15, 1
      // Predicated region
      $region13: #{_lambda_.2} parent=11 // pred_check
        %p250 = pneg %p62
      $region14: #{_lambda_.2} parent=11 // pred_check_branch
        %252 = sbr.rel (%p250) target = $region16
      $region15: #{_lambda_.2} parent=11 // pred_region
        _
      $region16: #{_lambda_.2} parent=11 // pred_fallthru
        _
      // Predicated region
      $region17: #{_lambda_.2} parent=11 // pred_check
        %p253 = pneg %p83
      $region18: #{_lambda_.2} parent=11 // pred_check_branch
        %255 = sbr.rel (%p253) target = $region20
      $region19: #{_lambda_.2} parent=11 // pred_region
        _
      $region20: #{_lambda_.2} parent=11 // pred_fallthru
        _
      // Predicated region
      $region21: #{_lambda_.2} parent=11 // pred_check
        %p256 = pneg %p104
      $region22: #{_lambda_.2} parent=11 // pred_check_branch
        %258 = sbr.rel (%p256) target = $region24
      $region23: #{_lambda_.2} parent=11 // pred_region
        _
      $region24: #{_lambda_.2} parent=11 // pred_fallthru
        _
      // Predicated region
      $region25: #{_lambda_.2} parent=11 // pred_check
        %p259 = pneg %p125
      $region26: #{_lambda_.2} parent=11 // pred_check_branch
        %261 = sbr.rel (%p259) target = $region28
      $region27: #{_lambda_.2} parent=11 // pred_region
        _
      $region28: #{_lambda_.2} parent=11 // pred_fallthru
        _
      // Predicated region
      $region29: #{_lambda_.2} parent=11 // pred_check
        %p262 = pneg %p146
      $region30: #{_lambda_.2} parent=11 // pred_check_branch
        %264 = sbr.rel (%p262) target = $region32
      $region31: #{_lambda_.2} parent=11 // pred_region
        _
      $region32: #{_lambda_.2} parent=11 // pred_fallthru
        _
      // Predicated region
      $region33: #{_lambda_.2} parent=11 // pred_check
        %p265 = pneg %p167
      $region34: #{_lambda_.2} parent=11 // pred_check_branch
        %267 = sbr.rel (%p265) target = $region36
      $region35: #{_lambda_.2} parent=11 // pred_region
        _
      $region36: #{_lambda_.2} parent=11 // pred_fallthru
        _
      // Predicated region
      $region37: #{_lambda_.2} parent=11 // pred_check
        %p268 = pneg %p188
      $region38: #{_lambda_.2} parent=11 // pred_check_branch
        %270 = sbr.rel (%p268) target = $region40
      $region39: #{_lambda_.2} parent=11 // pred_region
        _
      $region40: #{_lambda_.2} parent=11 // pred_fallthru
        _
      // Predicated region
      $region41: #{_lambda_.2} parent=11 // pred_check
        %p271 = pneg %p209
      $region42: #{_lambda_.2} parent=11 // pred_check_branch
        %273 = sbr.rel (%p271) target = $region44
      $region43: #{_lambda_.2} parent=11 // pred_region
        _
      $region44: #{_lambda_.2} parent=11 // pred_fallthru
        _
    $region12: #{_lambda_.2} parent=5 // pred_fallthru
      _
    %p274 = scmp.lt.s32.totalorder %s15, 2
    // Predicated region
    $region45: #{_lambda_.2} parent=5 // pred_check
      %p275 = pneg %p274
    $region46: #{_lambda_.2} parent=5 // pred_check_branch
      %277 = sbr.rel (%p275) target = $region48
    $region47: #{_lambda_.2} parent=5 // pred_region
      // Predicated region
      $region49: #{_lambda_.2} parent=47 // pred_check
        %p278 = pneg %p35
      $region50: #{_lambda_.2} parent=47 // pred_check_branch
        %280 = sbr.rel (%p278) target = $region52
      $region51: #{_lambda_.2} parent=47 // pred_region
        %p281 = scmp.lt.s32.totalorder %s15, 1
        %s282 = scalar_select %p281, %s15, 1
        %s283 = smul.addr %s282, 4
        %s284 = scalar_lea.vmem %s0, %s283
      $region52: #{_lambda_.2} parent=47 // pred_fallthru
        _
    $region48: #{_lambda_.2} parent=5 // pred_fallthru
      _
    %p285 = scmp.le.s32.totalorder 1, %s15
    %p286 = scmp.lt.s32.totalorder %s15, 3
    %p287 = pnand %p285, %p286
    %p288 = pneg %p287
    // Predicated region
    $region53: #{_lambda_.2} parent=5 // pred_check
      _
    $region54: #{_lambda_.2} parent=5 // pred_check_branch
      %290 = sbr.rel (%p287) target = $region56
    $region55: #{_lambda_.2} parent=5 // pred_region
      %s291 = ssub.s32 %s15, 1
      %p292 = scmp.lt.s32.totalorder %s20, 1
      %s293 = scalar_select %p292, %s20, 1
      %s294 = smul.addr %s293, 4
      %s295 = scalar_lea.vmem %s0, %s294
      %p296 = pneg %p41
      %p297 = pneg %p38
      %p298 = pneg %p62
      %p299 = pneg %p59
      %p300 = pneg %p83
      %p301 = pneg %p80
      %p302 = pneg %p104
      %p303 = pneg %p101
      %p304 = pneg %p125
      %p305 = pneg %p122
      %p306 = pneg %p146
      %p307 = pneg %p143
      %p308 = pneg %p167
      %p309 = pneg %p164
      %p310 = pneg %p188
      %p311 = pneg %p185
      %p312 = pneg %p209
      %p313 = pneg %p206
      %p314 = pneg %p235
      %p315 = pneg %p232
      %p316 = scmp.lt.s32.totalorder %s20, 1
      %s317 = scalar_select %p316, %s20, 1
      %s318 = smul.addr %s317, 2
      %s319 = smul.addr %s318, 4
      %s320 = scalar_lea.vmem %s9, %s319
      %p321 = scmp.lt.s32.totalorder %s20, 1
      %s322 = scalar_select %p321, %s20, 1
      %s323 = smul.addr %s322, 4
      %s324 = scalar_lea.vmem %s0, %s323
      %p325 = scmp.lt.s32.totalorder %s20, 1
      %s326 = scalar_select %p325, %s20, 1
      %s327 = smul.addr %s326, 2
      %s328 = smul.addr %s327, 4
      %s329 = scalar_lea.vmem %s9, %s328
      %v331 = vld [vmem:[%s324] sm:$0xf]
      %v333 = vunpack.c.l.b16 %v331
      %v334 = vpack.c.b16 %v333, %v333
      %335 = vrot.lane.b32.xlu0 %v334, 127
      %v336 = vpop.permute.xlu0 %335
      %337 = vrot.lane.b32.xlu0 %v334, 126
      %v338 = vpop.permute.xlu0 %337
      %339 = vrot.lane.b32.xlu0 %v334, 125
      %v340 = vpop.permute.xlu0 %339
      %341 = vrot.lane.b32.xlu0 %v334, 124
      %v342 = vpop.permute.xlu0 %341
      %vm343 = vcmask 1043456
      %v346 = vsel %vm343, %v331, %v336
      %v350 = vsel %vm343, %v338, %v340
      %v352 = vld [vmem:[%s1] sm:$0xf]
      %v353 = vld [vmem:[%s1 + $0x4] sm:$0xf]
      %v356 = vunpack.c.l.b16 %v352
      %v357 = vunpack.c.l.b16 %v353
      %v358 = vpack.c.b16 %v357, %v356
      %vm359 = vcmask 326656
      %v361 = vsel %vm359, %v358, 0
      %v364 = vsel %vm343, %v342, 0
      %366 = vmatprep.subr.bf16.mxu0 0
      %367 = vmatpush1.bf16.msra.mxu0 %v346
      %368 = vmatprep.subr.bf16.mxu0 0
      %369 = vmatpush1.bf16.msra.mxu0 %v350
      %370 = vmatprep.subr.bf16.mxu0 0
      %371 = vmatpush1.bf16.msra.mxu0 %v364
      %372 = vmatprep.subr.bf16.mxu0 0
      %373 = vmatpush1.bf16.msra.mxu0 0
      %374 = vmatprep.subr.bf16.mxu0 0
      %375 = vmatpush1.bf16.msra.mxu0 0
      %376 = vmatprep.subr.bf16.mxu0 0
      %377 = vmatpush1.bf16.msra.mxu0 0
      %378 = vmatprep.subr.bf16.mxu0 0
      %379 = vmatpush1.bf16.msra.mxu0 0
      %380 = vmatprep.subr.bf16.mxu0 0
      %381 = vmatpush1.bf16.msra.mxu0 0
      %382 = vmatprep.subr.bf16.mxu0 0
      %383 = vmatpush1.bf16.msra.mxu0 0
      %384 = vmatprep.subr.bf16.mxu0 0
      %385 = vmatpush1.bf16.msra.mxu0 0
      %386 = vmatprep.subr.bf16.mxu0 0
      %387 = vmatpush1.bf16.msra.mxu0 0
      %388 = vmatprep.subr.bf16.mxu0 0
      %389 = vmatpush1.bf16.msra.mxu0 0
      %390 = vmatprep.subr.bf16.mxu0 0
      %391 = vmatpush1.bf16.msra.mxu0 0
      %392 = vmatprep.subr.bf16.mxu0 0
      %393 = vmatpush1.bf16.msra.mxu0 0
      %394 = vmatprep.subr.bf16.mxu0 0
      %395 = vmatpush1.bf16.msra.mxu0 0
      %396 = vmatprep.subr.bf16.mxu0 0
      %397 = vmatpush1.bf16.msra.mxu0 0
      %398 = vmatprep.mubr.bf16.mxu0 0
      %399 = vmatmul.mubr.bf16.gmra.mrb[0].mxu0 %v361
      %v400 = vpop.f32.mrb[0].mxu0
      %v401 = vadd.f32 0.0, %v400
      %v402 = vpop.f32.mrb[0].mxu0
      %v403 = vpop.f32.mrb[0].mxu0
      %v404 = vadd.f32 0.0, %v403
      %v405 = vpop.f32.mrb[0].mxu0
      %406 = vdwg.mxu0
      %v407 = vld [vmem:[%s2] sm:$0xff]
      %v408 = vld [vmem:[%s2 + $0x8] sm:$0xff]
      %410 = vset.pattern.permute.xlu0 0
      %411 = vperm.xlu0 %410, %v407
      %v412 = vpop.permute.xlu0 %411
      %415 = vset.pattern.permute.xlu0 0
      %416 = vperm.xlu0 %415, %v408
      %v417 = vpop.permute.xlu0 %416
      %v419 = vmul.f32 %v401, %v412
      %v420 = vmul.f32 %v404, %v417
      %v421 = vld [vmem:[%s3] sm:$0xff]
      %v422 = vld [vmem:[%s3 + $0x8] sm:$0xff]
      %424 = vset.pattern.permute.xlu0 0
      %425 = vperm.xlu0 %424, %v421
      %v426 = vpop.permute.xlu0 %425
      %429 = vset.pattern.permute.xlu0 0
      %430 = vperm.xlu0 %429, %v422
      %v431 = vpop.permute.xlu0 %430
      %v433 = vadd.f32 %v419, %v426
      %v434 = vadd.f32 %v420, %v431
      %v435 = vmax.f32 %v433, 0.0
      %v436 = vmax.f32 %v434, 0.0
      %v437 = vpack.c.bf16 %v436, %v435
      %439 = vrot.lane.b32.xlu0 %v437, 2
      %v440 = vpop.permute.xlu0 %439
      %vm441 = vcmask 15360
      %v444 = vsel %vm441, 0, %v440
      %vm445 = vcmask 146432
      %v446 = vsel %vm445, %v444, 0
      %449 = vrot.lane.b32.xlu0 %v446, 127
      %v450 = vpop.permute.xlu0 %449
      %452 = vrot.lane.b32.xlu0 %v446, 126
      %v453 = vpop.permute.xlu0 %452
      %455 = vrot.lane.b32.xlu0 %v446, 125
      %v456 = vpop.permute.xlu0 %455
      %458 = vrot.lane.b32.xlu0 %v446, 124
      %v459 = vpop.permute.xlu0 %458
      %v461 = vld [vmem:[%s4] sm:$0xf]
      %v462 = vld [vmem:[%s4 + $0x4] sm:$0xf]
      %v465 = vunpack.c.l.b16 %v461
      %v466 = vunpack.c.l.b16 %v462
      %v467 = vpack.c.b16 %v466, %v465
      %vm468 = vcmask 654336
      %v470 = vsel %vm468, %v467, 0
      %472 = vmatprep.subr.bf16.mxu0 0
      %473 = vmatpush1.bf16.msra.mxu0 %v446
      %474 = vmatprep.subr.bf16.mxu0 0
      %475 = vmatpush1.bf16.msra.mxu0 %v450
      %476 = vmatprep.subr.bf16.mxu0 0
      %477 = vmatpush1.bf16.msra.mxu0 %v453
      %478 = vmatprep.subr.bf16.mxu0 0
      %479 = vmatpush1.bf16.msra.mxu0 %v456
      %480 = vmatprep.subr.bf16.mxu0 0
      %481 = vmatpush1.bf16.msra.mxu0 %v459
      %482 = vmatprep.subr.bf16.mxu0 0
      %483 = vmatpush1.bf16.msra.mxu0 0
      %484 = vmatprep.subr.bf16.mxu0 0
      %485 = vmatpush1.bf16.msra.mxu0 0
      %486 = vmatprep.subr.bf16.mxu0 0
      %487 = vmatpush1.bf16.msra.mxu0 0
      %488 = vmatprep.subr.bf16.mxu0 0
      %489 = vmatpush1.bf16.msra.mxu0 0
      %490 = vmatprep.subr.bf16.mxu0 0
      %491 = vmatpush1.bf16.msra.mxu0 0
      %492 = vmatprep.subr.bf16.mxu0 0
      %493 = vmatpush1.bf16.msra.mxu0 0
      %494 = vmatprep.subr.bf16.mxu0 0
      %495 = vmatpush1.bf16.msra.mxu0 0
      %496 = vmatprep.subr.bf16.mxu0 0
      %497 = vmatpush1.bf16.msra.mxu0 0
      %498 = vmatprep.subr.bf16.mxu0 0
      %499 = vmatpush1.bf16.msra.mxu0 0
      %500 = vmatprep.subr.bf16.mxu0 0
      %501 = vmatpush1.bf16.msra.mxu0 0
      %502 = vmatprep.subr.bf16.mxu0 0
      %503 = vmatpush1.bf16.msra.mxu0 0
      %504 = vmatprep.mubr.bf16.mxu0 0
      %505 = vmatmul.mubr.bf16.gmra.mrb[0].mxu0 %v470
      %v506 = vpop.f32.mrb[0].mxu0
      %v507 = vadd.f32 0.0, %v506
      %v508 = vpop.f32.mrb[0].mxu0
      %v509 = vpop.f32.mrb[0].mxu0
      %v510 = vadd.f32 0.0, %v509
      %v511 = vpop.f32.mrb[0].mxu0
      %512 = vdwg.mxu0
      %v513 = vld [vmem:[%s5] sm:$0xff]
      %v514 = vld [vmem:[%s5 + $0x8] sm:$0xff]
      %516 = vset.pattern.permute.xlu0 0
      %517 = vperm.xlu0 %516, %v513
      %v518 = vpop.permute.xlu0 %517
      %521 = vset.pattern.permute.xlu0 0
      %522 = vperm.xlu0 %521, %v514
      %v523 = vpop.permute.xlu0 %522
      %v525 = vmul.f32 %v507, %v518
      %v526 = vmul.f32 %v510, %v523
      %v527 = vld [vmem:[%s6] sm:$0xff]
      %v528 = vld [vmem:[%s6 + $0x8] sm:$0xff]
      %530 = vset.pattern.permute.xlu0 0
      %531 = vperm.xlu0 %530, %v527
      %v532 = vpop.permute.xlu0 %531
      %535 = vset.pattern.permute.xlu0 0
      %536 = vperm.xlu0 %535, %v528
      %v537 = vpop.permute.xlu0 %536
      %v539 = vadd.f32 %v525, %v532
      %v540 = vadd.f32 %v526, %v537
      %v541 = vld [vmem:[%s7] sm:$0xf]
      %v542 = vld [vmem:[%s7 + $0x4] sm:$0xf]
      %v543 = vld [vmem:[%s8] sm:$0xff]
      %v544 = vld [vmem:[%s8 + $0x8] sm:$0xff]
      %546 = vset.pattern.permute.xlu0 0
      %547 = vperm.xlu0 %546, %v543
      %v548 = vpop.permute.xlu0 %547
      %551 = vset.pattern.permute.xlu0 0
      %552 = vperm.xlu0 %551, %v544
      %v553 = vpop.permute.xlu0 %552
      %v557 = vunpack.c.l.b16 %v541
      %v558 = vunpack.c.l.b16 %v542
      %v559 = vpack.c.b16 %v558, %v557
      %vm560 = vcmask 64512
      %v562 = vsel %vm560, %v559, 0
      %v564 = vsel %vm343, %v338, 0
      %566 = vmatprep.subr.bf16.mxu0 0
      %567 = vmatpush1.bf16.msra.mxu0 %v564
      %568 = vmatprep.subr.bf16.mxu0 0
      %569 = vmatpush1.bf16.msra.mxu0 0
      %570 = vmatprep.subr.bf16.mxu0 0
      %571 = vmatpush1.bf16.msra.mxu0 0
      %572 = vmatprep.subr.bf16.mxu0 0
      %573 = vmatpush1.bf16.msra.mxu0 0
      %574 = vmatprep.subr.bf16.mxu0 0
      %575 = vmatpush1.bf16.msra.mxu0 0
      %576 = vmatprep.subr.bf16.mxu0 0
      %577 = vmatpush1.bf16.msra.mxu0 0
      %578 = vmatprep.subr.bf16.mxu0 0
      %579 = vmatpush1.bf16.msra.mxu0 0
      %580 = vmatprep.subr.bf16.mxu0 0
      %581 = vmatpush1.bf16.msra.mxu0 0
      %582 = vmatprep.subr.bf16.mxu0 0
      %583 = vmatpush1.bf16.msra.mxu0 0
      %584 = vmatprep.subr.bf16.mxu0 0
      %585 = vmatpush1.bf16.msra.mxu0 0
      %586 = vmatprep.subr.bf16.mxu0 0
      %587 = vmatpush1.bf16.msra.mxu0 0
      %588 = vmatprep.subr.bf16.mxu0 0
      %589 = vmatpush1.bf16.msra.mxu0 0
      %590 = vmatprep.subr.bf16.mxu0 0
      %591 = vmatpush1.bf16.msra.mxu0 0
      %592 = vmatprep.subr.bf16.mxu0 0
      %593 = vmatpush1.bf16.msra.mxu0 0
      %594 = vmatprep.subr.bf16.mxu0 0
      %595 = vmatpush1.bf16.msra.mxu0 0
      %596 = vmatprep.subr.bf16.mxu0 0
      %597 = vmatpush1.bf16.msra.mxu0 0
      %598 = vmatprep.mubr.bf16.mxu0 0
      %599 = vmatmul.mubr.bf16.gmra.mrb[0].mxu0 %v562
      %v600 = vpop.f32.mrb[0].mxu0
      %v601 = vadd.f32 %v548, %v600
      %v602 = vpop.f32.mrb[0].mxu0
      %v603 = vpop.f32.mrb[0].mxu0
      %v604 = vadd.f32 %v553, %v603
      %v605 = vpop.f32.mrb[0].mxu0
      %606 = vdwg.mxu0
      %v607 = vadd.f32 %v539, %v601
      %v608 = vadd.f32 %v540, %v604
      %v609 = vmax.f32 %v607, 0.0
      %v610 = vmax.f32 %v608, 0.0
      %v611 = vpack.c.bf16 %v610, %v609
      %vm612 = vcmask 27648
      %613 = vst.msk [vmem:[%s329] sm:$0xf] %vm612, 0
      %614 = vst.msk [vmem:[%s329 + $0x4] sm:$0xf] %vm612, 0
      %vm615 = vcmask 191648
      %616 = vst.msk [vmem:[%s329] sm:$0xf] %vm615, 0
      %617 = vst.msk [vmem:[%s329 + $0x4] sm:$0xf] %vm615, 0
      %v619 = vunpack.c.l.b16 %v611
      %v620 = vunpack.c.h.b16 %v611
      %v621 = vpack.c.b16 %v619, %v619
      %v622 = vpack.c.b16 %v620, %v620
      %623 = vrot.lane.b32.xlu0 %v621, 4
      %v624 = vpop.permute.xlu0 %623
      %625 = vrot.lane.b32.xlu0 %v622, 4
      %v626 = vpop.permute.xlu0 %625
      %vm629 = vcmask 158752
      %630 = vst.msk [vmem:[%s329] sm:$0xf] %vm629, %v624
      %631 = vst.msk [vmem:[%s329 + $0x4] sm:$0xf] %vm629, %v626
      %p632 = scmp.lt.s32.totalorder %s20, 1
      %s633 = scalar_select %p632, %s20, 1
      %s634 = smul.addr %s633, 2
      %s635 = smul.addr %s634, 4
      %s636 = scalar_lea.vmem %s9, %s635
      // Predicated region
      $region57: #{_lambda_.2} parent=55 // pred_check
        %p637 = pneg %p232
      $region58: #{_lambda_.2} parent=55 // pred_check_branch
        %639 = sbr.rel (%p637) target = $region60
      $region59: #{_lambda_.2} parent=55 // pred_region
        _
      $region60: #{_lambda_.2} parent=55 // pred_fallthru
        _
    $region56: #{_lambda_.2} parent=5 // pred_fallthru
      _
    %p640 = scmp.le.s32.totalorder 2, %s15
    // Predicated region
    $region61: #{_lambda_.2} parent=5 // pred_check
      %p641 = pneg %p640
    $region62: #{_lambda_.2} parent=5 // pred_check_branch
      %643 = sbr.rel (%p641) target = $region64
    $region63: #{_lambda_.2} parent=5 // pred_region
      %s644 = ssub.s32 %s15, 2
      // Predicated region
      $region65: #{_lambda_.2} parent=63 // pred_check
        %p645 = pneg %p238
      $region66: #{_lambda_.2} parent=63 // pred_check_branch
        %647 = sbr.rel (%p645) target = $region68
      $region67: #{_lambda_.2} parent=63 // pred_region
        %p648 = scmp.lt.s32.totalorder %s21, 1
        %s649 = scalar_select %p648, %s21, 1
        %s650 = smul.addr %s649, 2
        %s651 = smul.addr %s650, 4
        %s652 = scalar_lea.vmem %s9, %s651
      $region68: #{_lambda_.2} parent=63 // pred_fallthru
        _
    $region64: #{_lambda_.2} parent=5 // pred_fallthru
      _
  $region6: #{_lambda_.2} parent=0 // loop_footer
    %s19 = sadd.s32 1, %s15
  $region7: #{_lambda_.2} parent=0 // loop_footer_branch
    %14 = sbr.rel target = $region3
  $region8: #{_lambda_.2} parent=0 // loop_exit
    _

</llo_original>
